<compile_context>
chip_gen: v7x
topology: tpu7x:2x2x1
jax: 0.10.0
libtpu: 0.0.40
codegen_flags: <defaults>
</compile_context>

<pallas_src>
import jax
import jax.numpy as jnp
from jax import lax
from jax.experimental import pallas as pl
from jax.experimental.pallas import tpu as pltpu


_LANE = 128
_MAX_UNROLL = 32          # above this, use lax.fori_loop(..., unroll=8)


def _round_up(v, m):
    return -(-v // m) * m


def _vmem_capacity_bytes():
    try:
        info = pltpu.get_tpu_info()
        cap = getattr(info, "vmem_capacity_bytes", None)
        if cap:
            return int(cap)
    except Exception:
        pass
    return 64 * 1024 * 1024        # conservative (v7x-sized) fallback


def _make_lstm_kernel(Hp, t_blk, tail, n_t_blocks):
    """Recurrent kernel; gate column order inside the kernel is [i, f, o, g]."""
    Gp = 4 * Hp

    def kernel(gx_ref, whh_ref, out_ref, hn_ref, cn_ref, h_sc, c_sc):
        tb = pl.program_id(1)                      # time-block axis (sequential)

        @pl.when(tb == 0)
        def _():
            h_sc[...] = jnp.zeros_like(h_sc)
            c_sc[...] = jnp.zeros_like(c_sc)

        w_hh = whh_ref[...]                        # (Hp, 4Hp), VMEM-resident

        def step(lt, h, c):
            # Time-major block: gx_ref[lt] is a contiguous lane-dense (b_blk, 4Hp) tile.
            gates = gx_ref[lt].astype(jnp.float32) + jnp.dot(
                h.astype(w_hh.dtype), w_hh, preferred_element_type=jnp.float32)
            # sigmoid(x) == 0.5*(tanh(0.5*x)+1): one EUP op for the whole 3Hp slab.
            ifo = 0.5 * (jnp.tanh(0.5 * gates[:, :3 * Hp]) + 1.0)
            g_g = jnp.tanh(gates[:, 3 * Hp:])
            i_g = ifo[:, 0 * Hp:1 * Hp]
            f_g = ifo[:, 1 * Hp:2 * Hp]
            o_g = ifo[:, 2 * Hp:3 * Hp]
            c_new = f_g * c + i_g * g_g
            h_new = o_g * jnp.tanh(c_new)
            out_ref[lt] = h_new.astype(out_ref.dtype)   # lane-dense (b_blk, Hp) store
            return h_new, c_new

        def run_steps(nsteps):
            # h/c live in vregs across the whole block; scratch touched once per block.
            h = h_sc[...]
            c = c_sc[...]
            if nsteps <= _MAX_UNROLL:
                for lt in range(nsteps):
                    h, c = step(lt, h, c)
            else:
                def body(lt, carry):
                    return step(lt, carry[0], carry[1])
                h, c = lax.fori_loop(0, nsteps, body, (h, c), unroll=8)
            h_sc[...] = h
            c_sc[...] = c

        if tail == t_blk:
            run_steps(t_blk)                       # T divides evenly: no padded steps
        else:
            @pl.when(tb < n_t_blocks - 1)
            def _():
                run_steps(t_blk)

            @pl.when(tb == n_t_blocks - 1)
            def _():
                run_steps(tail)                    # only the valid tail timesteps

        @pl.when(tb == n_t_blocks - 1)
        def _():
            hn_ref[0] = h_sc[...].astype(hn_ref.dtype)
            cn_ref[0] = c_sc[...].astype(cn_ref.dtype)

    return kernel


def _reorder_pad_gates(w, H, Hp):
    """PyTorch gate-row order [i, f, g, o] -> kernel order [i, f, o, g]; each gate
    zero-padded from H to Hp rows so every per-gate slice is 128-lane aligned."""
    i_, f_, g_, o_ = (w[k * H:(k + 1) * H] for k in range(4))
    pad = [(0, Hp - H)] + [(0, 0)] * (w.ndim - 1)
    return jnp.concatenate([jnp.pad(b, pad) for b in (i_, f_, o_, g_)], axis=0)


def event_lstm_forward(x, w_ih, w_hh, b_ih, b_hh, *, t_blk=None, b_blk=None,
                       weights_dtype=jnp.float32):
    """
    x     : (B, T, I)  batch-first, like PyTorch nn.LSTM(batch_first=True)
    w_ih  : (4H, I), w_hh : (4H, H), b_ih / b_hh : (4H,)  (PyTorch gate order [i,f,g,o])
    Returns (e_out, (e_h_n, e_h_c)):
      e_out : (B, T, H), e_h_n : (1, B, H), e_h_c : (1, B, H)
    """
    B, T, I = x.shape
    H = w_hh.shape[1]
    Hp = _round_up(H, _LANE)                  # lane-aligned hidden width
    Gp = 4 * Hp
    bpe_w = jnp.dtype(weights_dtype).itemsize
    out_bpe = 4                               # e_out / h_n / c_n stay f32 (module semantics)

    # ---- batch blocking (gives v7x's second TensorCore independent work) ----
    if b_blk is None:
        b_blk = B
    else:
        b_blk = int(b_blk)
        if B % b_blk != 0:
            raise ValueError("b_blk must divide B")
        granule = 8 * max(1, 4 // bpe_w)      # sublane granule of gates_x dtype
        if b_blk != B and b_blk % granule != 0:
            raise ValueError(f"b_blk must be a multiple of {granule} (or equal B)")
    n_b_blocks = B // b_blk

    # ---- generation-aware VMEM budget and time-block sizing ----
    vmem_budget = max(32 << 20, min(int(0.8 * _vmem_capacity_bytes()), 100 << 20))
    b_gx = _round_up(b_blk, 8 * max(1, 4 // bpe_w))    # sublane-padded block sizes
    b_f32 = _round_up(b_blk, 8)
    fixed = (Hp * Gp * bpe_w                  # resident W_hh^T
             + 2 * b_f32 * Hp * 4             # h/c carries
             + 4 * b_f32 * Hp * 4)            # h_n / c_n blocks
    per_t = (2 * b_gx * Gp * bpe_w            # double-buffered gates_x block
             + 2 * b_f32 * Hp * out_bpe)      # double-buffered out block
    if t_blk is None:
        avail = max(vmem_budget - fixed - (2 << 20), per_t)
        t_blk = int(max(1, min(T, avail // per_t)))
    else:
        t_blk = int(max(1, min(int(t_blk), T)))
    n_t_blocks = int(pl.cdiv(T, t_blk))
    T_pad = n_t_blocks * t_blk
    tail = T - (n_t_blocks - 1) * t_blk

    # ---- parameter prep: reorder to [i,f,o,g], pad to Hp, fold biases ----
    w_ih_p = _reorder_pad_gates(w_ih, H, Hp)                                   # (4Hp, I)
    w_hh_p = jnp.pad(_reorder_pad_gates(w_hh, H, Hp), ((0, 0), (0, Hp - H)))   # (4Hp, Hp)
    bias_p = _reorder_pad_gates(b_ih + b_hh, H, Hp)                            # (4Hp,)

    # Hoisted input projection, TIME-MAJOR: one big MXU matmul over all T*B rows.
    gates_x = jnp.einsum(
        'bti,gi->tbg',
        x.astype(weights_dtype), w_ih_p.astype(weights_dtype),
        preferred_element_type=jnp.float32,
    ) + bias_p.astype(jnp.float32)[None, None, :]
    gates_x = gates_x.astype(weights_dtype)                                    # (T, B, 4Hp)
    if T_pad != T:
        gates_x = jnp.pad(gates_x, ((0, T_pad - T), (0, 0), (0, 0)))

    whh_t = jnp.transpose(w_hh_p).astype(weights_dtype)                        # (Hp, 4Hp)

    kernel = _make_lstm_kernel(Hp, t_blk, tail, n_t_blocks)

    cost = pl.CostEstimate(
        flops=int(2 * T * B * Hp * Gp + 12 * T * B * Hp),
        transcendentals=int(5 * T * B * Hp),
        bytes_accessed=int(T_pad * B * Gp * bpe_w + Hp * Gp * bpe_w
                           + T_pad * B * Hp * out_bpe + 2 * B * Hp * 4),
    )

    grid_spec = pltpu.PrefetchScalarGridSpec(
        num_scalar_prefetch=0,
        grid=(n_b_blocks, n_t_blocks),
        in_specs=[
            pl.BlockSpec((t_blk, b_blk, Gp), lambda bb, tb: (tb, bb, 0)),  # gates_x (T-major)
            pl.BlockSpec((Hp, Gp), lambda bb, tb: (0, 0)),                 # W_hh^T (resident)
        ],
        out_specs=[
            pl.BlockSpec((t_blk, b_blk, Hp), lambda bb, tb: (tb, bb, 0)),  # e_out (T-major)
            pl.BlockSpec((1, b_blk, Hp), lambda bb, tb: (0, bb, 0)),       # h_n
            pl.BlockSpec((1, b_blk, Hp), lambda bb, tb: (0, bb, 0)),       # c_n
        ],
        scratch_shapes=[
            pltpu.VMEM((b_blk, Hp), jnp.float32),                          # h carry
            pltpu.VMEM((b_blk, Hp), jnp.float32),                          # c carry
        ],
    )

    out_tm, h_n, c_n = pl.pallas_call(
        kernel,
        grid_spec=grid_spec,
        out_shape=(
            jax.ShapeDtypeStruct((T_pad, B, Hp), jnp.float32),
            jax.ShapeDtypeStruct((1, B, Hp), jnp.float32),
            jax.ShapeDtypeStruct((1, B, Hp), jnp.float32),
        ),
        compiler_params=pltpu.CompilerParams(
            dimension_semantics=("parallel", "arbitrary"),
            vmem_limit_bytes=int(vmem_budget),
        ),
        cost_estimate=cost,
    )(gates_x, whh_t)

    # Single XLA transpose back to batch-first; slice away T / H padding.
    e_out = jnp.transpose(out_tm[:T, :, :H], (1, 0, 2))
    return e_out, (h_n[:, :, :H], c_n[:, :, :H])


def _reference_lstm(x, w_ih, w_hh, b_ih, b_hh):
    """Pure-JAX reference (matches PyTorch nn.LSTM single layer, batch_first)."""
    B, T, I = x.shape
    H = w_hh.shape[1]
    b = (b_ih + b_hh).astype(jnp.float32)

    def step(carry, x_t):
        h, c = carry
        gates = x_t @ w_ih.T + h @ w_hh.T + b
        i = jax.nn.sigmoid(gates[:, 0 * H:1 * H])
        f = jax.nn.sigmoid(gates[:, 1 * H:2 * H])
        g = jnp.tanh(gates[:, 2 * H:3 * H])
        o = jax.nn.sigmoid(gates[:, 3 * H:4 * H])
        c = f * c + i * g
        h = o * jnp.tanh(c)
        return (h, c), h

    h0 = jnp.zeros((B, H), jnp.float32)
    c0 = jnp.zeros((B, H), jnp.float32)
    (h_n, c_n), outs = lax.scan(
        step, (h0, c0), jnp.transpose(x, (1, 0, 2)).astype(jnp.float32))
    return jnp.transpose(outs, (1, 0, 2)), (h_n[None], c_n[None])


if __name__ == "__main__":
    # Module config: input_size=I, hidden_size=H, num_layers=1, batch_first=True.
    B, T, I, H = 2, 8, 16, 32

    key = jax.random.PRNGKey(0)
    kx, kx2, kx3, kx4, k1, k2, k3, k4 = jax.random.split(key, 8)

    # Deterministic parameter init, same shapes as nn.LSTM(I, H, num_layers=1).
    bound = 1.0 / jnp.sqrt(H)
    w_ih = jax.random.uniform(k1, (4 * H, I), jnp.float32, -bound, bound)
    w_hh = jax.random.uniform(k2, (4 * H, H), jnp.float32, -bound, bound)
    b_ih = jax.random.uniform(k3, (4 * H,), jnp.float32, -bound, bound)
    b_hh = jax.random.uniform(k4, (4 * H,), jnp.float32, -bound, bound)
    # Emulate the forget_gate_bias option (forget-gate slice [H:2H]) deterministically.
    forget_gate_bias = 1.0
    b_ih = b_ih.at[H:2 * H].set(forget_gate_bias / 2.0)
    b_hh = b_hh.at[H:2 * H].set(forget_gate_bias / 2.0)

    x = jax.random.normal(kx, (B, T, I), jnp.float32)

    # 1) f32, single block (whole sequence resident, fully unrolled).
    e_out, (e_h_n, e_h_c) = event_lstm_forward(x, w_ih, w_hh, b_ih, b_hh)
    jax.block_until_ready((e_out, e_h_n, e_h_c))
    r_out, (r_h_n, r_h_c) = _reference_lstm(x, w_ih, w_hh, b_ih, b_hh)
    assert e_out.shape == (B, T, H) and e_h_n.shape == (1, B, H) and e_h_c.shape == (1, B, H)
    assert jnp.allclose(e_out, r_out, atol=1e-4, rtol=1e-4)
    assert jnp.allclose(e_h_n, r_h_n, atol=1e-4, rtol=1e-4)
    assert jnp.allclose(e_h_c, r_h_c, atol=1e-4, rtol=1e-4)

    # 2) Multi-block with non-dividing tail (carry across grid steps + tail-only path).
    T2 = 20
    x2 = jax.random.normal(kx2, (B, T2, I), jnp.float32)
    e2, (h2, c2) = event_lstm_forward(x2, w_ih, w_hh, b_ih, b_hh, t_blk=8)
    jax.block_until_ready((e2, h2, c2))
    r2, (rh2, rc2) = _reference_lstm(x2, w_ih, w_hh, b_ih, b_hh)
    assert e2.shape == (B, T2, H)
    assert jnp.allclose(e2, r2, atol=1e-4, rtol=1e-4)
    assert jnp.allclose(h2, rh2, atol=1e-4, rtol=1e-4)
    assert jnp.allclose(c2, rc2, atol=1e-4, rtol=1e-4)

    # 3) Long block -> lax.fori_loop(unroll=8) path.
    T3 = 72
    x3 = jax.random.normal(kx3, (B, T3, I), jnp.float32)
    e3, (h3, c3) = event_lstm_forward(x3, w_ih, w_hh, b_ih, b_hh)
    jax.block_until_ready((e3, h3, c3))
    r3, (rh3, rc3) = _reference_lstm(x3, w_ih, w_hh, b_ih, b_hh)
    assert jnp.allclose(e3, r3, atol=1e-4, rtol=1e-4)
    assert jnp.allclose(h3, rh3, atol=1e-4, rtol=1e-4)
    assert jnp.allclose(c3, rc3, atol=1e-4, rtol=1e-4)

    # 4) bf16 resident weights / streamed gates_x (f32 accumulation + carries).
    e4, (h4, c4) = event_lstm_forward(x, w_ih, w_hh, b_ih, b_hh,
                                      weights_dtype=jnp.bfloat16)
    jax.block_until_ready((e4, h4, c4))
    assert jnp.allclose(e4, r_out, atol=5e-2, rtol=5e-2)
    assert jnp.allclose(h4, r_h_n, atol=5e-2, rtol=5e-2)
    assert jnp.allclose(c4, r_h_c, atol=5e-2, rtol=5e-2)

    # 5) Batch-split grid (parallel axis for v7x megacore): B=16, b_blk=8.
    B5, T5 = 16, 12
    x5 = jax.random.normal(kx4, (B5, T5, I), jnp.float32)
    e5, (h5, c5) = event_lstm_forward(x5, w_ih, w_hh, b_ih, b_hh, b_blk=8)
    jax.block_until_ready((e5, h5, c5))
    r5, (rh5, rc5) = _reference_lstm(x5, w_ih, w_hh, b_ih, b_hh)
    assert e5.shape == (B5, T5, H)
    assert jnp.allclose(e5, r5, atol=1e-4, rtol=1e-4)
    assert jnp.allclose(h5, rh5, atol=1e-4, rtol=1e-4)
    assert jnp.allclose(c5, rc5, atol=1e-4, rtol=1e-4)

    print("KERNEL_OK")
</pallas_src>

<mosaic_0001>
module attributes {stable_mosaic.version = 11 : i64} {
  func.func @kernel(%arg0: i32, %arg1: i32, %arg2: memref<8x2x512xf32, #tpu.memory_space<vmem>>, %arg3: memref<128x512xf32, #tpu.memory_space<vmem>>, %arg4: memref<8x2x128xf32, #tpu.memory_space<vmem>>, %arg5: memref<1x2x128xf32, #tpu.memory_space<vmem>>, %arg6: memref<1x2x128xf32, #tpu.memory_space<vmem>>, %arg7: memref<2x128xf32, #tpu.memory_space<vmem>>, %arg8: memref<2x128xf32, #tpu.memory_space<vmem>>) attributes {dimension_semantics = [#tpu.dimension_semantics<parallel>, #tpu.dimension_semantics<arbitrary>], iteration_bounds = array<i64: 1, 1>, scalar_prefetch = 0 : i64, scratch_operands = 2 : i64, tpu.core_type = #tpu.core_type<tc>, window_params = [{transform_indices = @transform_0, window_bounds = array<i64: 8, 2, 512>}, {pipeline_mode = #tpu.pipeline_mode<synchronous>, transform_indices = @transform_1, window_bounds = array<i64: 128, 512>}, {transform_indices = @transform_2, window_bounds = array<i64: 8, 2, 128>}, {transform_indices = @transform_3, window_bounds = array<i64: 1, 2, 128>}, {transform_indices = @transform_4, window_bounds = array<i64: 1, 2, 128>}]} {
    %c0_i32 = arith.constant 0 : i32
    %0 = arith.cmpi eq, %arg1, %c0_i32 : i32
    %1 = arith.extui %0 : i1 to i32
    %c0_i32_0 = arith.constant 0 : i32
    %2 = arith.cmpi ne, %1, %c0_i32_0 : i32
    scf.if %2 {
      %cst_84 = arith.constant 0.000000e+00 : f32
      %211 = vector.broadcast %cst_84 : f32 to vector<2x128xf32>
      %c0_85 = arith.constant 0 : index
      %c0_86 = arith.constant 0 : index
      %212 = vector.load %arg7[%c0_85, %c0_86] : memref<2x128xf32, #tpu.memory_space<vmem>>, vector<2x128xf32>
      tpu.vector_store %arg7[%c0_85, %c0_86], %211 {strides = array<i32>} : memref<2x128xf32, #tpu.memory_space<vmem>>, vector<2x128xf32>,
      %cst_87 = arith.constant 0.000000e+00 : f32
      %213 = vector.broadcast %cst_87 : f32 to vector<2x128xf32>
      %c0_88 = arith.constant 0 : index
      %c0_89 = arith.constant 0 : index
      %214 = vector.load %arg8[%c0_88, %c0_89] : memref<2x128xf32, #tpu.memory_space<vmem>>, vector<2x128xf32>
      tpu.vector_store %arg8[%c0_88, %c0_89], %213 {strides = array<i32>} : memref<2x128xf32, #tpu.memory_space<vmem>>, vector<2x128xf32>,
    } else {
    }
    %c0 = arith.constant 0 : index
    %c0_1 = arith.constant 0 : index
    %3 = vector.load %arg3[%c0, %c0_1] : memref<128x512xf32, #tpu.memory_space<vmem>>, vector<128x512xf32>
    %c0_2 = arith.constant 0 : index
    %c0_3 = arith.constant 0 : index
    %4 = vector.load %arg7[%c0_2, %c0_3] : memref<2x128xf32, #tpu.memory_space<vmem>>, vector<2x128xf32>
    %c0_4 = arith.constant 0 : index
    %c0_5 = arith.constant 0 : index
    %5 = vector.load %arg8[%c0_4, %c0_5] : memref<2x128xf32, #tpu.memory_space<vmem>>, vector<2x128xf32>
    %c0_6 = arith.constant 0 : index
    %c0_7 = arith.constant 0 : index
    %c0_8 = arith.constant 0 : index
    %6 = vector.load %arg2[%c0_6, %c0_7, %c0_8] : memref<8x2x512xf32, #tpu.memory_space<vmem>>, vector<1x2x512xf32>
    %7 = vector.shape_cast %6 : vector<1x2x512xf32> to vector<2x512xf32>
    %cst = arith.constant dense<0.000000e+00> : vector<2x512xf32>
    %8 = tpu.matmul %4, %3, %cst {dimension_numbers = #tpu.dot_dimension_numbers<[1], [0], [0], [1], [0, 0, 1, 1], [], []>} : vector<2x128xf32>, vector<128x512xf32>, vector<2x512xf32> -> vector<2x512xf32>
    %9 = arith.addf %7, %8 : vector<2x512xf32>
    %10 = vector.extract_strided_slice %9 {offsets = [0, 0], sizes = [2, 384], strides = [1, 1]} : vector<2x512xf32> to vector<2x384xf32>
    %cst_9 = arith.constant 5.000000e-01 : f32
    %11 = vector.broadcast %cst_9 : f32 to vector<2x384xf32>
    %12 = arith.mulf %11, %10 : vector<2x384xf32>
    %13 = math.tanh %12 : vector<2x384xf32>
    %cst_10 = arith.constant 1.000000e+00 : f32
    %14 = vector.broadcast %cst_10 : f32 to vector<2x384xf32>
    %15 = arith.addf %13, %14 : vector<2x384xf32>
    %cst_11 = arith.constant 5.000000e-01 : f32
    %16 = vector.broadcast %cst_11 : f32 to vector<2x384xf32>
    %17 = arith.mulf %16, %15 : vector<2x384xf32>
    %18 = vector.extract_strided_slice %9 {offsets = [0, 384], sizes = [2, 128], strides = [1, 1]} : vector<2x512xf32> to vector<2x128xf32>
    %19 = math.tanh %18 : vector<2x128xf32>
    %20 = vector.extract_strided_slice %17 {offsets = [0, 0], sizes = [2, 128], strides = [1, 1]} : vector<2x384xf32> to vector<2x128xf32>
    %21 = vector.extract_strided_slice %17 {offsets = [0, 128], sizes = [2, 128], strides = [1, 1]} : vector<2x384xf32> to vector<2x128xf32>
    %22 = vector.extract_strided_slice %17 {offsets = [0, 256], sizes = [2, 128], strides = [1, 1]} : vector<2x384xf32> to vector<2x128xf32>
    %23 = arith.mulf %21, %5 : vector<2x128xf32>
    %24 = arith.mulf %20, %19 : vector<2x128xf32>
    %25 = arith.addf %23, %24 : vector<2x128xf32>
    %26 = math.tanh %25 : vector<2x128xf32>
    %27 = arith.mulf %22, %26 : vector<2x128xf32>
    %c0_12 = arith.constant 0 : index
    %c0_13 = arith.constant 0 : index
    %c0_14 = arith.constant 0 : index
    %28 = vector.load %arg4[%c0_12, %c0_13, %c0_14] : memref<8x2x128xf32, #tpu.memory_space<vmem>>, vector<1x2x128xf32>
    %29 = vector.shape_cast %28 : vector<1x2x128xf32> to vector<2x128xf32>
    %30 = vector.shape_cast %27 : vector<2x128xf32> to vector<1x2x128xf32>
    tpu.vector_store %arg4[%c0_12, %c0_13, %c0_14], %30 {strides = array<i32>} : memref<8x2x128xf32, #tpu.memory_space<vmem>>, vector<1x2x128xf32>,
    %c1 = arith.constant 1 : index
    %c0_15 = arith.constant 0 : index
    %c0_16 = arith.constant 0 : index
    %31 = vector.load %arg2[%c1, %c0_15, %c0_16] : memref<8x2x512xf32, #tpu.memory_space<vmem>>, vector<1x2x512xf32>
    %32 = vector.shape_cast %31 : vector<1x2x512xf32> to vector<2x512xf32>
    %cst_17 = arith.constant dense<0.000000e+00> : vector<2x512xf32>
    %33 = tpu.matmul %27, %3, %cst_17 {dimension_numbers = #tpu.dot_dimension_numbers<[1], [0], [0], [1], [0, 0, 1, 1], [], []>} : vector<2x128xf32>, vector<128x512xf32>, vector<2x512xf32> -> vector<2x512xf32>
    %34 = arith.addf %32, %33 : vector<2x512xf32>
    %35 = vector.extract_strided_slice %34 {offsets = [0, 0], sizes = [2, 384], strides = [1, 1]} : vector<2x512xf32> to vector<2x384xf32>
    %cst_18 = arith.constant 5.000000e-01 : f32
    %36 = vector.broadcast %cst_18 : f32 to vector<2x384xf32>
    %37 = arith.mulf %36, %35 : vector<2x384xf32>
    %38 = math.tanh %37 : vector<2x384xf32>
    %cst_19 = arith.constant 1.000000e+00 : f32
    %39 = vector.broadcast %cst_19 : f32 to vector<2x384xf32>
    %40 = arith.addf %38, %39 : vector<2x384xf32>
    %cst_20 = arith.constant 5.000000e-01 : f32
    %41 = vector.broadcast %cst_20 : f32 to vector<2x384xf32>
    %42 = arith.mulf %41, %40 : vector<2x384xf32>
    %43 = vector.extract_strided_slice %34 {offsets = [0, 384], sizes = [2, 128], strides = [1, 1]} : vector<2x512xf32> to vector<2x128xf32>
    %44 = math.tanh %43 : vector<2x128xf32>
    %45 = vector.extract_strided_slice %42 {offsets = [0, 0], sizes = [2, 128], strides = [1, 1]} : vector<2x384xf32> to vector<2x128xf32>
    %46 = vector.extract_strided_slice %42 {offsets = [0, 128], sizes = [2, 128], strides = [1, 1]} : vector<2x384xf32> to vector<2x128xf32>
    %47 = vector.extract_strided_slice %42 {offsets = [0, 256], sizes = [2, 128], strides = [1, 1]} : vector<2x384xf32> to vector<2x128xf32>
    %48 = arith.mulf %46, %25 : vector<2x128xf32>
    %49 = arith.mulf %45, %44 : vector<2x128xf32>
    %50 = arith.addf %48, %49 : vector<2x128xf32>
    %51 = math.tanh %50 : vector<2x128xf32>
    %52 = arith.mulf %47, %51 : vector<2x128xf32>
    %c1_21 = arith.constant 1 : index
    %c0_22 = arith.constant 0 : index
    %c0_23 = arith.constant 0 : index
    %53 = vector.load %arg4[%c1_21, %c0_22, %c0_23] : memref<8x2x128xf32, #tpu.memory_space<vmem>>, vector<1x2x128xf32>
    %54 = vector.shape_cast %53 : vector<1x2x128xf32> to vector<2x128xf32>
    %55 = vector.shape_cast %52 : vector<2x128xf32> to vector<1x2x128xf32>
    tpu.vector_store %arg4[%c1_21, %c0_22, %c0_23], %55 {strides = array<i32>} : memref<8x2x128xf32, #tpu.memory_space<vmem>>, vector<1x2x128xf32>,
    %c2 = arith.constant 2 : index
    %c0_24 = arith.constant 0 : index
    %c0_25 = arith.constant 0 : index
    %56 = vector.load %arg2[%c2, %c0_24, %c0_25] : memref<8x2x512xf32, #tpu.memory_space<vmem>>, vector<1x2x512xf32>
    %57 = vector.shape_cast %56 : vector<1x2x512xf32> to vector<2x512xf32>
    %cst_26 = arith.constant dense<0.000000e+00> : vector<2x512xf32>
    %58 = tpu.matmul %52, %3, %cst_26 {dimension_numbers = #tpu.dot_dimension_numbers<[1], [0], [0], [1], [0, 0, 1, 1], [], []>} : vector<2x128xf32>, vector<128x512xf32>, vector<2x512xf32> -> vector<2x512xf32>
    %59 = arith.addf %57, %58 : vector<2x512xf32>
    %60 = vector.extract_strided_slice %59 {offsets = [0, 0], sizes = [2, 384], strides = [1, 1]} : vector<2x512xf32> to vector<2x384xf32>
    %cst_27 = arith.constant 5.000000e-01 : f32
    %61 = vector.broadcast %cst_27 : f32 to vector<2x384xf32>
    %62 = arith.mulf %61, %60 : vector<2x384xf32>
    %63 = math.tanh %62 : vector<2x384xf32>
    %cst_28 = arith.constant 1.000000e+00 : f32
    %64 = vector.broadcast %cst_28 : f32 to vector<2x384xf32>
    %65 = arith.addf %63, %64 : vector<2x384xf32>
    %cst_29 = arith.constant 5.000000e-01 : f32
    %66 = vector.broadcast %cst_29 : f32 to vector<2x384xf32>
    %67 = arith.mulf %66, %65 : vector<2x384xf32>
    %68 = vector.extract_strided_slice %59 {offsets = [0, 384], sizes = [2, 128], strides = [1, 1]} : vector<2x512xf32> to vector<2x128xf32>
    %69 = math.tanh %68 : vector<2x128xf32>
    %70 = vector.extract_strided_slice %67 {offsets = [0, 0], sizes = [2, 128], strides = [1, 1]} : vector<2x384xf32> to vector<2x128xf32>
    %71 = vector.extract_strided_slice %67 {offsets = [0, 128], sizes = [2, 128], strides = [1, 1]} : vector<2x384xf32> to vector<2x128xf32>
    %72 = vector.extract_strided_slice %67 {offsets = [0, 256], sizes = [2, 128], strides = [1, 1]} : vector<2x384xf32> to vector<2x128xf32>
    %73 = arith.mulf %71, %50 : vector<2x128xf32>
    %74 = arith.mulf %70, %69 : vector<2x128xf32>
    %75 = arith.addf %73, %74 : vector<2x128xf32>
    %76 = math.tanh %75 : vector<2x128xf32>
    %77 = arith.mulf %72, %76 : vector<2x128xf32>
    %c2_30 = arith.constant 2 : index
    %c0_31 = arith.constant 0 : index
    %c0_32 = arith.constant 0 : index
    %78 = vector.load %arg4[%c2_30, %c0_31, %c0_32] : memref<8x2x128xf32, #tpu.memory_space<vmem>>, vector<1x2x128xf32>
    %79 = vector.shape_cast %78 : vector<1x2x128xf32> to vector<2x128xf32>
    %80 = vector.shape_cast %77 : vector<2x128xf32> to vector<1x2x128xf32>
    tpu.vector_store %arg4[%c2_30, %c0_31, %c0_32], %80 {strides = array<i32>} : memref<8x2x128xf32, #tpu.memory_space<vmem>>, vector<1x2x128xf32>,
    %c3 = arith.constant 3 : index
    %c0_33 = arith.constant 0 : index
    %c0_34 = arith.constant 0 : index
    %81 = vector.load %arg2[%c3, %c0_33, %c0_34] : memref<8x2x512xf32, #tpu.memory_space<vmem>>, vector<1x2x512xf32>
    %82 = vector.shape_cast %81 : vector<1x2x512xf32> to vector<2x512xf32>
    %cst_35 = arith.constant dense<0.000000e+00> : vector<2x512xf32>
    %83 = tpu.matmul %77, %3, %cst_35 {dimension_numbers = #tpu.dot_dimension_numbers<[1], [0], [0], [1], [0, 0, 1, 1], [], []>} : vector<2x128xf32>, vector<128x512xf32>, vector<2x512xf32> -> vector<2x512xf32>
    %84 = arith.addf %82, %83 : vector<2x512xf32>
    %85 = vector.extract_strided_slice %84 {offsets = [0, 0], sizes = [2, 384], strides = [1, 1]} : vector<2x512xf32> to vector<2x384xf32>
    %cst_36 = arith.constant 5.000000e-01 : f32
    %86 = vector.broadcast %cst_36 : f32 to vector<2x384xf32>
    %87 = arith.mulf %86, %85 : vector<2x384xf32>
    %88 = math.tanh %87 : vector<2x384xf32>
    %cst_37 = arith.constant 1.000000e+00 : f32
    %89 = vector.broadcast %cst_37 : f32 to vector<2x384xf32>
    %90 = arith.addf %88, %89 : vector<2x384xf32>
    %cst_38 = arith.constant 5.000000e-01 : f32
    %91 = vector.broadcast %cst_38 : f32 to vector<2x384xf32>
    %92 = arith.mulf %91, %90 : vector<2x384xf32>
    %93 = vector.extract_strided_slice %84 {offsets = [0, 384], sizes = [2, 128], strides = [1, 1]} : vector<2x512xf32> to vector<2x128xf32>
    %94 = math.tanh %93 : vector<2x128xf32>
    %95 = vector.extract_strided_slice %92 {offsets = [0, 0], sizes = [2, 128], strides = [1, 1]} : vector<2x384xf32> to vector<2x128xf32>
    %96 = vector.extract_strided_slice %92 {offsets = [0, 128], sizes = [2, 128], strides = [1, 1]} : vector<2x384xf32> to vector<2x128xf32>
    %97 = vector.extract_strided_slice %92 {offsets = [0, 256], sizes = [2, 128], strides = [1, 1]} : vector<2x384xf32> to vector<2x128xf32>
    %98 = arith.mulf %96, %75 : vector<2x128xf32>
    %99 = arith.mulf %95, %94 : vector<2x128xf32>
    %100 = arith.addf %98, %99 : vector<2x128xf32>
    %101 = math.tanh %100 : vector<2x128xf32>
    %102 = arith.mulf %97, %101 : vector<2x128xf32>
    %c3_39 = arith.constant 3 : index
    %c0_40 = arith.constant 0 : index
    %c0_41 = arith.constant 0 : index
    %103 = vector.load %arg4[%c3_39, %c0_40, %c0_41] : memref<8x2x128xf32, #tpu.memory_space<vmem>>, vector<1x2x128xf32>
    %104 = vector.shape_cast %103 : vector<1x2x128xf32> to vector<2x128xf32>
    %105 = vector.shape_cast %102 : vector<2x128xf32> to vector<1x2x128xf32>
    tpu.vector_store %arg4[%c3_39, %c0_40, %c0_41], %105 {strides = array<i32>} : memref<8x2x128xf32, #tpu.memory_space<vmem>>, vector<1x2x128xf32>,
    %c4 = arith.constant 4 : index
    %c0_42 = arith.constant 0 : index
    %c0_43 = arith.constant 0 : index
    %106 = vector.load %arg2[%c4, %c0_42, %c0_43] : memref<8x2x512xf32, #tpu.memory_space<vmem>>, vector<1x2x512xf32>
    %107 = vector.shape_cast %106 : vector<1x2x512xf32> to vector<2x512xf32>
    %cst_44 = arith.constant dense<0.000000e+00> : vector<2x512xf32>
    %108 = tpu.matmul %102, %3, %cst_44 {dimension_numbers = #tpu.dot_dimension_numbers<[1], [0], [0], [1], [0, 0, 1, 1], [], []>} : vector<2x128xf32>, vector<128x512xf32>, vector<2x512xf32> -> vector<2x512xf32>
    %109 = arith.addf %107, %108 : vector<2x512xf32>
    %110 = vector.extract_strided_slice %109 {offsets = [0, 0], sizes = [2, 384], strides = [1, 1]} : vector<2x512xf32> to vector<2x384xf32>
    %cst_45 = arith.constant 5.000000e-01 : f32
    %111 = vector.broadcast %cst_45 : f32 to vector<2x384xf32>
    %112 = arith.mulf %111, %110 : vector<2x384xf32>
    %113 = math.tanh %112 : vector<2x384xf32>
    %cst_46 = arith.constant 1.000000e+00 : f32
    %114 = vector.broadcast %cst_46 : f32 to vector<2x384xf32>
    %115 = arith.addf %113, %114 : vector<2x384xf32>
    %cst_47 = arith.constant 5.000000e-01 : f32
    %116 = vector.broadcast %cst_47 : f32 to vector<2x384xf32>
    %117 = arith.mulf %116, %115 : vector<2x384xf32>
    %118 = vector.extract_strided_slice %109 {offsets = [0, 384], sizes = [2, 128], strides = [1, 1]} : vector<2x512xf32> to vector<2x128xf32>
    %119 = math.tanh %118 : vector<2x128xf32>
    %120 = vector.extract_strided_slice %117 {offsets = [0, 0], sizes = [2, 128], strides = [1, 1]} : vector<2x384xf32> to vector<2x128xf32>
    %121 = vector.extract_strided_slice %117 {offsets = [0, 128], sizes = [2, 128], strides = [1, 1]} : vector<2x384xf32> to vector<2x128xf32>
    %122 = vector.extract_strided_slice %117 {offsets = [0, 256], sizes = [2, 128], strides = [1, 1]} : vector<2x384xf32> to vector<2x128xf32>
    %123 = arith.mulf %121, %100 : vector<2x128xf32>
    %124 = arith.mulf %120, %119 : vector<2x128xf32>
    %125 = arith.addf %123, %124 : vector<2x128xf32>
    %126 = math.tanh %125 : vector<2x128xf32>
    %127 = arith.mulf %122, %126 : vector<2x128xf32>
    %c4_48 = arith.constant 4 : index
    %c0_49 = arith.constant 0 : index
    %c0_50 = arith.constant 0 : index
    %128 = vector.load %arg4[%c4_48, %c0_49, %c0_50] : memref<8x2x128xf32, #tpu.memory_space<vmem>>, vector<1x2x128xf32>
    %129 = vector.shape_cast %128 : vector<1x2x128xf32> to vector<2x128xf32>
    %130 = vector.shape_cast %127 : vector<2x128xf32> to vector<1x2x128xf32>
    tpu.vector_store %arg4[%c4_48, %c0_49, %c0_50], %130 {strides = array<i32>} : memref<8x2x128xf32, #tpu.memory_space<vmem>>, vector<1x2x128xf32>,
    %c5 = arith.constant 5 : index
    %c0_51 = arith.constant 0 : index
    %c0_52 = arith.constant 0 : index
    %131 = vector.load %arg2[%c5, %c0_51, %c0_52] : memref<8x2x512xf32, #tpu.memory_space<vmem>>, vector<1x2x512xf32>
    %132 = vector.shape_cast %131 : vector<1x2x512xf32> to vector<2x512xf32>
    %cst_53 = arith.constant dense<0.000000e+00> : vector<2x512xf32>
    %133 = tpu.matmul %127, %3, %cst_53 {dimension_numbers = #tpu.dot_dimension_numbers<[1], [0], [0], [1], [0, 0, 1, 1], [], []>} : vector<2x128xf32>, vector<128x512xf32>, vector<2x512xf32> -> vector<2x512xf32>
    %134 = arith.addf %132, %133 : vector<2x512xf32>
    %135 = vector.extract_strided_slice %134 {offsets = [0, 0], sizes = [2, 384], strides = [1, 1]} : vector<2x512xf32> to vector<2x384xf32>
    %cst_54 = arith.constant 5.000000e-01 : f32
    %136 = vector.broadcast %cst_54 : f32 to vector<2x384xf32>
    %137 = arith.mulf %136, %135 : vector<2x384xf32>
    %138 = math.tanh %137 : vector<2x384xf32>
    %cst_55 = arith.constant 1.000000e+00 : f32
    %139 = vector.broadcast %cst_55 : f32 to vector<2x384xf32>
    %140 = arith.addf %138, %139 : vector<2x384xf32>
    %cst_56 = arith.constant 5.000000e-01 : f32
    %141 = vector.broadcast %cst_56 : f32 to vector<2x384xf32>
    %142 = arith.mulf %141, %140 : vector<2x384xf32>
    %143 = vector.extract_strided_slice %134 {offsets = [0, 384], sizes = [2, 128], strides = [1, 1]} : vector<2x512xf32> to vector<2x128xf32>
    %144 = math.tanh %143 : vector<2x128xf32>
    %145 = vector.extract_strided_slice %142 {offsets = [0, 0], sizes = [2, 128], strides = [1, 1]} : vector<2x384xf32> to vector<2x128xf32>
    %146 = vector.extract_strided_slice %142 {offsets = [0, 128], sizes = [2, 128], strides = [1, 1]} : vector<2x384xf32> to vector<2x128xf32>
    %147 = vector.extract_strided_slice %142 {offsets = [0, 256], sizes = [2, 128], strides = [1, 1]} : vector<2x384xf32> to vector<2x128xf32>
    %148 = arith.mulf %146, %125 : vector<2x128xf32>
    %149 = arith.mulf %145, %144 : vector<2x128xf32>
    %150 = arith.addf %148, %149 : vector<2x128xf32>
    %151 = math.tanh %150 : vector<2x128xf32>
    %152 = arith.mulf %147, %151 : vector<2x128xf32>
    %c5_57 = arith.constant 5 : index
    %c0_58 = arith.constant 0 : index
    %c0_59 = arith.constant 0 : index
    %153 = vector.load %arg4[%c5_57, %c0_58, %c0_59] : memref<8x2x128xf32, #tpu.memory_space<vmem>>, vector<1x2x128xf32>
    %154 = vector.shape_cast %153 : vector<1x2x128xf32> to vector<2x128xf32>
    %155 = vector.shape_cast %152 : vector<2x128xf32> to vector<1x2x128xf32>
    tpu.vector_store %arg4[%c5_57, %c0_58, %c0_59], %155 {strides = array<i32>} : memref<8x2x128xf32, #tpu.memory_space<vmem>>, vector<1x2x128xf32>,
    %c6 = arith.constant 6 : index
    %c0_60 = arith.constant 0 : index
    %c0_61 = arith.constant 0 : index
    %156 = vector.load %arg2[%c6, %c0_60, %c0_61] : memref<8x2x512xf32, #tpu.memory_space<vmem>>, vector<1x2x512xf32>
    %157 = vector.shape_cast %156 : vector<1x2x512xf32> to vector<2x512xf32>
    %cst_62 = arith.constant dense<0.000000e+00> : vector<2x512xf32>
    %158 = tpu.matmul %152, %3, %cst_62 {dimension_numbers = #tpu.dot_dimension_numbers<[1], [0], [0], [1], [0, 0, 1, 1], [], []>} : vector<2x128xf32>, vector<128x512xf32>, vector<2x512xf32> -> vector<2x512xf32>
    %159 = arith.addf %157, %158 : vector<2x512xf32>
    %160 = vector.extract_strided_slice %159 {offsets = [0, 0], sizes = [2, 384], strides = [1, 1]} : vector<2x512xf32> to vector<2x384xf32>
    %cst_63 = arith.constant 5.000000e-01 : f32
    %161 = vector.broadcast %cst_63 : f32 to vector<2x384xf32>
    %162 = arith.mulf %161, %160 : vector<2x384xf32>
    %163 = math.tanh %162 : vector<2x384xf32>
    %cst_64 = arith.constant 1.000000e+00 : f32
    %164 = vector.broadcast %cst_64 : f32 to vector<2x384xf32>
    %165 = arith.addf %163, %164 : vector<2x384xf32>
    %cst_65 = arith.constant 5.000000e-01 : f32
    %166 = vector.broadcast %cst_65 : f32 to vector<2x384xf32>
    %167 = arith.mulf %166, %165 : vector<2x384xf32>
    %168 = vector.extract_strided_slice %159 {offsets = [0, 384], sizes = [2, 128], strides = [1, 1]} : vector<2x512xf32> to vector<2x128xf32>
    %169 = math.tanh %168 : vector<2x128xf32>
    %170 = vector.extract_strided_slice %167 {offsets = [0, 0], sizes = [2, 128], strides = [1, 1]} : vector<2x384xf32> to vector<2x128xf32>
    %171 = vector.extract_strided_slice %167 {offsets = [0, 128], sizes = [2, 128], strides = [1, 1]} : vector<2x384xf32> to vector<2x128xf32>
    %172 = vector.extract_strided_slice %167 {offsets = [0, 256], sizes = [2, 128], strides = [1, 1]} : vector<2x384xf32> to vector<2x128xf32>
    %173 = arith.mulf %171, %150 : vector<2x128xf32>
    %174 = arith.mulf %170, %169 : vector<2x128xf32>
    %175 = arith.addf %173, %174 : vector<2x128xf32>
    %176 = math.tanh %175 : vector<2x128xf32>
    %177 = arith.mulf %172, %176 : vector<2x128xf32>
    %c6_66 = arith.constant 6 : index
    %c0_67 = arith.constant 0 : index
    %c0_68 = arith.constant 0 : index
    %178 = vector.load %arg4[%c6_66, %c0_67, %c0_68] : memref<8x2x128xf32, #tpu.memory_space<vmem>>, vector<1x2x128xf32>
    %179 = vector.shape_cast %178 : vector<1x2x128xf32> to vector<2x128xf32>
    %180 = vector.shape_cast %177 : vector<2x128xf32> to vector<1x2x128xf32>
    tpu.vector_store %arg4[%c6_66, %c0_67, %c0_68], %180 {strides = array<i32>} : memref<8x2x128xf32, #tpu.memory_space<vmem>>, vector<1x2x128xf32>,
    %c7 = arith.constant 7 : index
    %c0_69 = arith.constant 0 : index
    %c0_70 = arith.constant 0 : index
    %181 = vector.load %arg2[%c7, %c0_69, %c0_70] : memref<8x2x512xf32, #tpu.memory_space<vmem>>, vector<1x2x512xf32>
    %182 = vector.shape_cast %181 : vector<1x2x512xf32> to vector<2x512xf32>
    %cst_71 = arith.constant dense<0.000000e+00> : vector<2x512xf32>
    %183 = tpu.matmul %177, %3, %cst_71 {dimension_numbers = #tpu.dot_dimension_numbers<[1], [0], [0], [1], [0, 0, 1, 1], [], []>} : vector<2x128xf32>, vector<128x512xf32>, vector<2x512xf32> -> vector<2x512xf32>
    %184 = arith.addf %182, %183 : vector<2x512xf32>
    %185 = vector.extract_strided_slice %184 {offsets = [0, 0], sizes = [2, 384], strides = [1, 1]} : vector<2x512xf32> to vector<2x384xf32>
    %cst_72 = arith.constant 5.000000e-01 : f32
    %186 = vector.broadcast %cst_72 : f32 to vector<2x384xf32>
    %187 = arith.mulf %186, %185 : vector<2x384xf32>
    %188 = math.tanh %187 : vector<2x384xf32>
    %cst_73 = arith.constant 1.000000e+00 : f32
    %189 = vector.broadcast %cst_73 : f32 to vector<2x384xf32>
    %190 = arith.addf %188, %189 : vector<2x384xf32>
    %cst_74 = arith.constant 5.000000e-01 : f32
    %191 = vector.broadcast %cst_74 : f32 to vector<2x384xf32>
    %192 = arith.mulf %191, %190 : vector<2x384xf32>
    %193 = vector.extract_strided_slice %184 {offsets = [0, 384], sizes = [2, 128], strides = [1, 1]} : vector<2x512xf32> to vector<2x128xf32>
    %194 = math.tanh %193 : vector<2x128xf32>
    %195 = vector.extract_strided_slice %192 {offsets = [0, 0], sizes = [2, 128], strides = [1, 1]} : vector<2x384xf32> to vector<2x128xf32>
    %196 = vector.extract_strided_slice %192 {offsets = [0, 128], sizes = [2, 128], strides = [1, 1]} : vector<2x384xf32> to vector<2x128xf32>
    %197 = vector.extract_strided_slice %192 {offsets = [0, 256], sizes = [2, 128], strides = [1, 1]} : vector<2x384xf32> to vector<2x128xf32>
    %198 = arith.mulf %196, %175 : vector<2x128xf32>
    %199 = arith.mulf %195, %194 : vector<2x128xf32>
    %200 = arith.addf %198, %199 : vector<2x128xf32>
    %201 = math.tanh %200 : vector<2x128xf32>
    %202 = arith.mulf %197, %201 : vector<2x128xf32>
    %c7_75 = arith.constant 7 : index
    %c0_76 = arith.constant 0 : index
    %c0_77 = arith.constant 0 : index
    %203 = vector.load %arg4[%c7_75, %c0_76, %c0_77] : memref<8x2x128xf32, #tpu.memory_space<vmem>>, vector<1x2x128xf32>
    %204 = vector.shape_cast %203 : vector<1x2x128xf32> to vector<2x128xf32>
    %205 = vector.shape_cast %202 : vector<2x128xf32> to vector<1x2x128xf32>
    tpu.vector_store %arg4[%c7_75, %c0_76, %c0_77], %205 {strides = array<i32>} : memref<8x2x128xf32, #tpu.memory_space<vmem>>, vector<1x2x128xf32>,
    %c0_78 = arith.constant 0 : index
    %c0_79 = arith.constant 0 : index
    %206 = vector.load %arg7[%c0_78, %c0_79] : memref<2x128xf32, #tpu.memory_space<vmem>>, vector<2x128xf32>
    tpu.vector_store %arg7[%c0_78, %c0_79], %202 {strides = array<i32>} : memref<2x128xf32, #tpu.memory_space<vmem>>, vector<2x128xf32>,
    %c0_80 = arith.constant 0 : index
    %c0_81 = arith.constant 0 : index
    %207 = vector.load %arg8[%c0_80, %c0_81] : memref<2x128xf32, #tpu.memory_space<vmem>>, vector<2x128xf32>
    tpu.vector_store %arg8[%c0_80, %c0_81], %200 {strides = array<i32>} : memref<2x128xf32, #tpu.memory_space<vmem>>, vector<2x128xf32>,
    %c0_i32_82 = arith.constant 0 : i32
    %208 = arith.cmpi eq, %arg1, %c0_i32_82 : i32
    %209 = arith.extui %208 : i1 to i32
    %c0_i32_83 = arith.constant 0 : i32
    %210 = arith.cmpi ne, %209, %c0_i32_83 : i32
    scf.if %210 {
      %c0_84 = arith.constant 0 : index
      %c0_85 = arith.constant 0 : index
      %211 = vector.load %arg7[%c0_84, %c0_85] : memref<2x128xf32, #tpu.memory_space<vmem>>, vector<2x128xf32>
      %c0_86 = arith.constant 0 : index
      %c0_87 = arith.constant 0 : index
      %c0_88 = arith.constant 0 : index
      %212 = vector.load %arg5[%c0_86, %c0_87, %c0_88] : memref<1x2x128xf32, #tpu.memory_space<vmem>>, vector<1x2x128xf32>
      %213 = vector.shape_cast %212 : vector<1x2x128xf32> to vector<2x128xf32>
      %214 = vector.shape_cast %211 : vector<2x128xf32> to vector<1x2x128xf32>
      tpu.vector_store %arg5[%c0_86, %c0_87, %c0_88], %214 {strides = array<i32>} : memref<1x2x128xf32, #tpu.memory_space<vmem>>, vector<1x2x128xf32>,
      %c0_89 = arith.constant 0 : index
      %c0_90 = arith.constant 0 : index
      %215 = vector.load %arg8[%c0_89, %c0_90] : memref<2x128xf32, #tpu.memory_space<vmem>>, vector<2x128xf32>
      %c0_91 = arith.constant 0 : index
      %c0_92 = arith.constant 0 : index
      %c0_93 = arith.constant 0 : index
      %216 = vector.load %arg6[%c0_91, %c0_92, %c0_93] : memref<1x2x128xf32, #tpu.memory_space<vmem>>, vector<1x2x128xf32>
      %217 = vector.shape_cast %216 : vector<1x2x128xf32> to vector<2x128xf32>
      %218 = vector.shape_cast %215 : vector<2x128xf32> to vector<1x2x128xf32>
      tpu.vector_store %arg6[%c0_91, %c0_92, %c0_93], %218 {strides = array<i32>} : memref<1x2x128xf32, #tpu.memory_space<vmem>>, vector<1x2x128xf32>,
    } else {
    }
    return
  }
  func.func @transform_0(%arg0: i32, %arg1: i32) -> (i32, i32, i32) {
    %c0_i32 = arith.constant 0 : i32
    %c0_i32_0 = arith.constant 0 : i32
    return %arg1, %arg0, %c0_i32 : i32, i32, i32
  }
  func.func @transform_1(%arg0: i32, %arg1: i32) -> (i32, i32) {
    %c0_i32 = arith.constant 0 : i32
    %c0_i32_0 = arith.constant 0 : i32
    %c0_i32_1 = arith.constant 0 : i32
    return %c0_i32, %c0_i32_0 : i32, i32
  }
  func.func @transform_2(%arg0: i32, %arg1: i32) -> (i32, i32, i32) {
    %c0_i32 = arith.constant 0 : i32
    %c0_i32_0 = arith.constant 0 : i32
    return %arg1, %arg0, %c0_i32 : i32, i32, i32
  }
  func.func @transform_3(%arg0: i32, %arg1: i32) -> (i32, i32, i32) {
    %c0_i32 = arith.constant 0 : i32
    %c0_i32_0 = arith.constant 0 : i32
    %c0_i32_1 = arith.constant 0 : i32
    return %c0_i32, %arg0, %c0_i32_0 : i32, i32, i32
  }
  func.func @transform_4(%arg0: i32, %arg1: i32) -> (i32, i32, i32) {
    %c0_i32 = arith.constant 0 : i32
    %c0_i32_0 = arith.constant 0 : i32
    %c0_i32_1 = arith.constant 0 : i32
    return %c0_i32, %arg0, %c0_i32_0 : i32, i32, i32
  }
}

</mosaic_0001>

<llo_original>
// kernel: tpu_custom_call.1
$region0: #{tpu_custom_call.1}
  #allocation0 [shape = 'u32[]', space=smem, size = 0x4, offset = 0x4, fixed_abs, tag = 'smem constant byte address 0x4 - core index']
  #allocation1 [shape = 'u32[144,128]{1,0:T(1,128)}', space=vmem, size = 0x12000, scoped, tag = 'internal scratch']
  #allocation2 [shape = 'f32[2,128]{1,0:T(2,128)}', space=vmem, size = 0x400, scoped, tag = 'scratch operand']
  #allocation3 [shape = 'f32[2,128]{1,0:T(2,128)}', space=vmem, size = 0x400, scoped, tag = 'scratch operand']
  %s0 = inlined_call_operand.hbm [shape: f32[8,2,512], index: 0, kind: input, shape index: {}]
  %s1 = inlined_call_operand.hbm [shape: f32[128,512], index: 1, kind: input, shape index: {}]
  %s2 = inlined_call_operand.hbm [shape: f32[8,2,128], index: 2, kind: output, shape index: {0}]
  %s3 = inlined_call_operand.hbm [shape: f32[1,2,128], index: 3, kind: output, shape index: {1}]
  %s4 = inlined_call_operand.hbm [shape: f32[1,2,128], index: 4, kind: output, shape index: {2}]
  %5 = xla_tuple %s2, %s3, %s4
  %s6 = sld [smem:[#allocation0]]
  $region50: #{tpu_custom_call.1} parent=0
    _
  %s8 = ssub.s32 1, %s6
  %s9 = scalar_select 0, %s8, %s6
  $region1: #{tpu_custom_call.1} parent=0
    #allocation4 [shape = 'u8[32768]{0}', space=vmem, size = 0x8000, scoped, tag = 'input window, operand 0, single buffered']
    #allocation5 [shape = 's32[1]{0}', space=sflag, size = 0x4, scoped, tag = 'scoped memory for tpu_custom_call.1']
    #allocation6 [shape = 's32[1]{0}', space=sflag, size = 0x4, scoped, tag = 'scoped memory for tpu_custom_call.1']
    #allocation7 [shape = 'u8[262144]{0}', space=vmem, size = 0x40000, scoped, tag = 'input window, operand 1, single buffered']
    #allocation8 [shape = 's32[1]{0}', space=sflag, size = 0x4, scoped, tag = 'scoped memory for tpu_custom_call.1']
    #allocation9 [shape = 'u8[8192]{0}', space=vmem, size = 0x2000, scoped, tag = 'output window, operand 0, single buffered']
    #allocation10 [shape = 'u8[1024]{0}', space=vmem, size = 0x400, scoped, tag = 'output window, operand 1, single buffered']
    #allocation11 [shape = 's32[1]{0}', space=sflag, size = 0x4, scoped, tag = 'scoped memory for tpu_custom_call.1']
    #allocation12 [shape = 'u8[1024]{0}', space=vmem, size = 0x400, scoped, tag = 'output window, operand 2, single buffered']
    %10 = vsyncpa [#allocation5], 0
    %11 = vsyncpa [#allocation8], 0
    %12 = vsyncpa [#allocation6], 0
    %13 = vsyncpa [#allocation11], 0
    // Predicated region
    $region2: #{tpu_custom_call.1} parent=1 // pred_check
      _
    $region3: #{tpu_custom_call.1} parent=1 // pred_check_branch
      %15 = sbr.rel (0) target = $region5
    $region4: #{tpu_custom_call.1} parent=1 // pred_region
      %s17 = ssub.s32 1024, 1024
      %18 = vsyncadd [#allocation5], %s17
      %s19 = sshll.u32 [#allocation4], 4
      %s20 = int_to_ptr.vmem [resolvable:$true] %s19
      %25 = dma.hbm_to_vmem [thread:$0]  %s0, 1024, %s20, [#allocation5], 128, 128, 8
    $region5: #{tpu_custom_call.1} parent=1 // pred_fallthru
      _
    // Predicated region
    $region6: #{tpu_custom_call.1} parent=1 // pred_check
      _
    $region7: #{tpu_custom_call.1} parent=1 // pred_check_branch
      %27 = sbr.rel (0) target = $region9
    $region8: #{tpu_custom_call.1} parent=1 // pred_region
      %s29 = ssub.s32 8192, 8192
      %30 = vsyncadd [#allocation8], %s29
      %s31 = sshll.u32 [#allocation7], 4
      %s32 = int_to_ptr.vmem [resolvable:$true] %s31
      %37 = dma.hbm_to_vmem [thread:$0]  %s1, 8192, %s32, [#allocation8], 512, 512, 32
    $region9: #{tpu_custom_call.1} parent=1 // pred_fallthru
      _
    // Predicated region
    $region10: #{tpu_custom_call.1} parent=1 // pred_check
      _
    $region11: #{tpu_custom_call.1} parent=1 // pred_check_branch
      %39 = sbr.rel (0) target = $region13
    $region12: #{tpu_custom_call.1} parent=1 // pred_region
      %40 = dma.done [#allocation5], 1024
    $region13: #{tpu_custom_call.1} parent=1 // pred_fallthru
      _
    // Predicated region
    $region14: #{tpu_custom_call.1} parent=1 // pred_check
      _
    $region15: #{tpu_custom_call.1} parent=1 // pred_check_branch
      %42 = sbr.rel (0) target = $region17
    $region16: #{tpu_custom_call.1} parent=1 // pred_region
      %43 = dma.done [#allocation8], 8192
    $region17: #{tpu_custom_call.1} parent=1 // pred_fallthru
      _
    %p44 = scmp.eq.s32.totalorder 0, 0
    // Predicated region
    $region18: #{tpu_custom_call.1} parent=1 // pred_check
      %p45 = pneg %p44
    $region19: #{tpu_custom_call.1} parent=1 // pred_check_branch
      %47 = sbr.rel (%p45) target = $region21
    $region20: #{tpu_custom_call.1} parent=1 // pred_region
      %48 = vst [vmem:[#allocation2] sm:$0x3] 0.0
      %49 = vst [vmem:[#allocation3] sm:$0x3] 0.0
    $region21: #{tpu_custom_call.1} parent=1 // pred_fallthru
      _
    %v50 = vld [vmem:[#allocation7] sm:$0xff]
    %v51 = vld [vmem:[#allocation7 + $0x8] sm:$0xff]
    %v52 = vld [vmem:[#allocation7 + $0x10] sm:$0xff]
    %v53 = vld [vmem:[#allocation7 + $0x18] sm:$0xff]
    %v54 = vld [vmem:[#allocation7 + $0x20] sm:$0xff]
    %v55 = vld [vmem:[#allocation7 + $0x28] sm:$0xff]
    %v56 = vld [vmem:[#allocation7 + $0x30] sm:$0xff]
    %v57 = vld [vmem:[#allocation7 + $0x38] sm:$0xff]
    %v58 = vld [vmem:[#allocation7 + $0x40] sm:$0xff]
    %v59 = vld [vmem:[#allocation7 + $0x48] sm:$0xff]
    %v60 = vld [vmem:[#allocation7 + $0x50] sm:$0xff]
    %v61 = vld [vmem:[#allocation7 + $0x58] sm:$0xff]
    %v62 = vld [vmem:[#allocation7 + $0x60] sm:$0xff]
    %v63 = vld [vmem:[#allocation7 + $0x68] sm:$0xff]
    %v64 = vld [vmem:[#allocation7 + $0x70] sm:$0xff]
    %v65 = vld [vmem:[#allocation7 + $0x78] sm:$0xff]
    %v66 = vld [vmem:[#allocation7 + $0x80] sm:$0xff]
    %v67 = vld [vmem:[#allocation7 + $0x88] sm:$0xff]
    %v68 = vld [vmem:[#allocation7 + $0x90] sm:$0xff]
    %v69 = vld [vmem:[#allocation7 + $0x98] sm:$0xff]
    %v70 = vld [vmem:[#allocation7 + $0xa0] sm:$0xff]
    %v71 = vld [vmem:[#allocation7 + $0xa8] sm:$0xff]
    %v72 = vld [vmem:[#allocation7 + $0xb0] sm:$0xff]
    %v73 = vld [vmem:[#allocation7 + $0xb8] sm:$0xff]
    %v74 = vld [vmem:[#allocation7 + $0xc0] sm:$0xff]
    %v75 = vld [vmem:[#allocation7 + $0xc8] sm:$0xff]
    %v76 = vld [vmem:[#allocation7 + $0xd0] sm:$0xff]
    %v77 = vld [vmem:[#allocation7 + $0xd8] sm:$0xff]
    %v78 = vld [vmem:[#allocation7 + $0xe0] sm:$0xff]
    %v79 = vld [vmem:[#allocation7 + $0xe8] sm:$0xff]
    %v80 = vld [vmem:[#allocation7 + $0xf0] sm:$0xff]
    %v81 = vld [vmem:[#allocation7 + $0xf8] sm:$0xff]
    %v82 = vld [vmem:[#allocation7 + $0x100] sm:$0xff]
    %v83 = vld [vmem:[#allocation7 + $0x108] sm:$0xff]
    %v84 = vld [vmem:[#allocation7 + $0x110] sm:$0xff]
    %v85 = vld [vmem:[#allocation7 + $0x118] sm:$0xff]
    %v86 = vld [vmem:[#allocation7 + $0x120] sm:$0xff]
    %v87 = vld [vmem:[#allocation7 + $0x128] sm:$0xff]
    %v88 = vld [vmem:[#allocation7 + $0x130] sm:$0xff]
    %v89 = vld [vmem:[#allocation7 + $0x138] sm:$0xff]
    %v90 = vld [vmem:[#allocation7 + $0x140] sm:$0xff]
    %v91 = vld [vmem:[#allocation7 + $0x148] sm:$0xff]
    %v92 = vld [vmem:[#allocation7 + $0x150] sm:$0xff]
    %v93 = vld [vmem:[#allocation7 + $0x158] sm:$0xff]
    %v94 = vld [vmem:[#allocation7 + $0x160] sm:$0xff]
    %v95 = vld [vmem:[#allocation7 + $0x168] sm:$0xff]
    %v96 = vld [vmem:[#allocation7 + $0x170] sm:$0xff]
    %v97 = vld [vmem:[#allocation7 + $0x178] sm:$0xff]
    %v98 = vld [vmem:[#allocation7 + $0x180] sm:$0xff]
    %v99 = vld [vmem:[#allocation7 + $0x188] sm:$0xff]
    %v100 = vld [vmem:[#allocation7 + $0x190] sm:$0xff]
    %v101 = vld [vmem:[#allocation7 + $0x198] sm:$0xff]
    %v102 = vld [vmem:[#allocation7 + $0x1a0] sm:$0xff]
    %v103 = vld [vmem:[#allocation7 + $0x1a8] sm:$0xff]
    %v104 = vld [vmem:[#allocation7 + $0x1b0] sm:$0xff]
    %v105 = vld [vmem:[#allocation7 + $0x1b8] sm:$0xff]
    %v106 = vld [vmem:[#allocation7 + $0x1c0] sm:$0xff]
    %v107 = vld [vmem:[#allocation7 + $0x1c8] sm:$0xff]
    %v108 = vld [vmem:[#allocation7 + $0x1d0] sm:$0xff]
    %v109 = vld [vmem:[#allocation7 + $0x1d8] sm:$0xff]
    %v110 = vld [vmem:[#allocation7 + $0x1e0] sm:$0xff]
    %v111 = vld [vmem:[#allocation7 + $0x1e8] sm:$0xff]
    %v112 = vld [vmem:[#allocation7 + $0x1f0] sm:$0xff]
    %v113 = vld [vmem:[#allocation7 + $0x1f8] sm:$0xff]
    %v114 = vld [vmem:[#allocation2] sm:$0x3]
    %v115 = vld [vmem:[#allocation3] sm:$0x3]
    %v116 = vld [vmem:[#allocation4] sm:$0xff]
    %117 = vmatprep.subr.mxu0 %v51
    %118 = vmatpush1.msra.mxu0 %v50
    %119 = vmatprep.subr.mxu0 %v55
    %120 = vmatpush1.msra.mxu0 %v54
    %121 = vmatprep.subr.mxu0 %v59
    %122 = vmatpush1.msra.mxu0 %v58
    %123 = vmatprep.subr.mxu0 %v63
    %124 = vmatpush1.msra.mxu0 %v62
    %125 = vmatprep.subr.mxu0 %v67
    %126 = vmatpush1.msra.mxu0 %v66
    %127 = vmatprep.subr.mxu0 %v71
    %128 = vmatpush1.msra.mxu0 %v70
    %129 = vmatprep.subr.mxu0 %v75
    %130 = vmatpush1.msra.mxu0 %v74
    %131 = vmatprep.subr.mxu0 %v79
    %132 = vmatpush1.msra.mxu0 %v78
    %133 = vmatprep.subr.mxu0 %v83
    %134 = vmatpush1.msra.mxu0 %v82
    %135 = vmatprep.subr.mxu0 %v87
    %136 = vmatpush1.msra.mxu0 %v86
    %137 = vmatprep.subr.mxu0 %v91
    %138 = vmatpush1.msra.mxu0 %v90
    %139 = vmatprep.subr.mxu0 %v95
    %140 = vmatpush1.msra.mxu0 %v94
    %141 = vmatprep.subr.mxu0 %v99
    %142 = vmatpush1.msra.mxu0 %v98
    %143 = vmatprep.subr.mxu0 %v103
    %144 = vmatpush1.msra.mxu0 %v102
    %145 = vmatprep.subr.mxu0 %v107
    %146 = vmatpush1.msra.mxu0 %v106
    %147 = vmatprep.subr.mxu0 %v111
    %148 = vmatpush1.msra.mxu0 %v110
    %149 = vmatprep.subr.mxu0 0.0
    %150 = vmatpush1.msra.mxu0 0.0
    %151 = vmatprep.subr.mxu0 0.0
    %152 = vmatpush1.msra.mxu0 0.0
    %153 = vmatprep.subr.mxu0 0.0
    %154 = vmatpush1.msra.mxu0 0.0
    %155 = vmatprep.subr.mxu0 0.0
    %156 = vmatpush1.msra.mxu0 0.0
    %157 = vmatprep.subr.mxu0 0.0
    %158 = vmatpush1.msra.mxu0 0.0
    %159 = vmatprep.subr.mxu0 0.0
    %160 = vmatpush1.msra.mxu0 0.0
    %161 = vmatprep.subr.mxu0 0.0
    %162 = vmatpush1.msra.mxu0 0.0
    %163 = vmatprep.subr.mxu0 0.0
    %164 = vmatpush1.msra.mxu0 0.0
    %165 = vmatprep.subr.mxu0 0.0
    %166 = vmatpush1.msra.mxu0 0.0
    %167 = vmatprep.subr.mxu0 0.0
    %168 = vmatpush1.msra.mxu0 0.0
    %169 = vmatprep.subr.mxu0 0.0
    %170 = vmatpush1.msra.mxu0 0.0
    %171 = vmatprep.subr.mxu0 0.0
    %172 = vmatpush1.msra.mxu0 0.0
    %173 = vmatprep.subr.mxu0 0.0
    %174 = vmatpush1.msra.mxu0 0.0
    %175 = vmatprep.subr.mxu0 0.0
    %176 = vmatpush1.msra.mxu0 0.0
    %177 = vmatprep.subr.mxu0 0.0
    %178 = vmatpush1.msra.mxu0 0.0
    %179 = vmatprep.subr.mxu0 0.0
    %180 = vmatpush1.msra.mxu0 0.0
    %181 = vmatprep.mubr.f32.mxu0 0.0
    %182 = vmatmul.mubr.f32.gmra.mrb[0].mxu0 %v114
    %v183 = vpop.f32.mrb[0].mxu0
    %v184 = vadd.f32 0.0, %v183
    %v185 = vpop.f32.mrb[0].mxu0
    %v186 = vadd.f32 0.0, %v185
    %187 = vdwg.mxu0
    %188 = vmatprep.subr.mxu0 %v53
    %189 = vmatpush1.msra.mxu0 %v52
    %190 = vmatprep.subr.mxu0 %v57
    %191 = vmatpush1.msra.mxu0 %v56
    %192 = vmatprep.subr.mxu0 %v61
    %193 = vmatpush1.msra.mxu0 %v60
    %194 = vmatprep.subr.mxu0 %v65
    %195 = vmatpush1.msra.mxu0 %v64
    %196 = vmatprep.subr.mxu0 %v69
    %197 = vmatpush1.msra.mxu0 %v68
    %198 = vmatprep.subr.mxu0 %v73
    %199 = vmatpush1.msra.mxu0 %v72
    %200 = vmatprep.subr.mxu0 %v77
    %201 = vmatpush1.msra.mxu0 %v76
    %202 = vmatprep.subr.mxu0 %v81
    %203 = vmatpush1.msra.mxu0 %v80
    %204 = vmatprep.subr.mxu0 %v85
    %205 = vmatpush1.msra.mxu0 %v84
    %206 = vmatprep.subr.mxu0 %v89
    %207 = vmatpush1.msra.mxu0 %v88
    %208 = vmatprep.subr.mxu0 %v93
    %209 = vmatpush1.msra.mxu0 %v92
    %210 = vmatprep.subr.mxu0 %v97
    %211 = vmatpush1.msra.mxu0 %v96
    %212 = vmatprep.subr.mxu0 %v101
    %213 = vmatpush1.msra.mxu0 %v100
    %214 = vmatprep.subr.mxu0 %v105
    %215 = vmatpush1.msra.mxu0 %v104
    %216 = vmatprep.subr.mxu0 %v109
    %217 = vmatpush1.msra.mxu0 %v108
    %218 = vmatprep.subr.mxu0 %v113
    %219 = vmatpush1.msra.mxu0 %v112
    %220 = vmatprep.subr.mxu0 0.0
    %221 = vmatpush1.msra.mxu0 0.0
    %222 = vmatprep.subr.mxu0 0.0
    %223 = vmatpush1.msra.mxu0 0.0
    %224 = vmatprep.subr.mxu0 0.0
    %225 = vmatpush1.msra.mxu0 0.0
    %226 = vmatprep.subr.mxu0 0.0
    %227 = vmatpush1.msra.mxu0 0.0
    %228 = vmatprep.subr.mxu0 0.0
    %229 = vmatpush1.msra.mxu0 0.0
    %230 = vmatprep.subr.mxu0 0.0
    %231 = vmatpush1.msra.mxu0 0.0
    %232 = vmatprep.subr.mxu0 0.0
    %233 = vmatpush1.msra.mxu0 0.0
    %234 = vmatprep.subr.mxu0 0.0
    %235 = vmatpush1.msra.mxu0 0.0
    %236 = vmatprep.subr.mxu0 0.0
    %237 = vmatpush1.msra.mxu0 0.0
    %238 = vmatprep.subr.mxu0 0.0
    %239 = vmatpush1.msra.mxu0 0.0
    %240 = vmatprep.subr.mxu0 0.0
    %241 = vmatpush1.msra.mxu0 0.0
    %242 = vmatprep.subr.mxu0 0.0
    %243 = vmatpush1.msra.mxu0 0.0
    %244 = vmatprep.subr.mxu0 0.0
    %245 = vmatpush1.msra.mxu0 0.0
    %246 = vmatprep.subr.mxu0 0.0
    %247 = vmatpush1.msra.mxu0 0.0
    %248 = vmatprep.subr.mxu0 0.0
    %249 = vmatpush1.msra.mxu0 0.0
    %250 = vmatprep.subr.mxu0 0.0
    %251 = vmatpush1.msra.mxu0 0.0
    %252 = vmatprep.mubr.f32.mxu0 0.0
    %253 = vmatmul.mubr.f32.gmra.mrb[0].mxu0 %v114
    %v254 = vpop.f32.mrb[0].mxu0
    %v255 = vadd.f32 0.0, %v254
    %v256 = vpop.f32.mrb[0].mxu0
    %v257 = vadd.f32 0.0, %v256
    %258 = vdwg.mxu0
    %v263 = vcombine.low %v184, %v186
    %v264 = vcombine.low %v255, %v257
    %v266 = vunpack.c.l.s4 1983009808
    %v267 = vunpack.c.0.s8 %v266
    %v268 = vlaneseq
    %v269 = vshrl.u32 %v268, 7
    %v270 = vsub.s32 %v267, %v269
    %v271 = vrot.slane %v263, %v270
    %v273 = vunpack.c.l.s4 1983009808
    %v274 = vunpack.c.0.s8 %v273
    %v275 = vlaneseq
    %v276 = vshrl.u32 %v275, 7
    %v277 = vsub.s32 %v274, %v276
    %v278 = vrot.slane %v264, %v277
    %v279 = vcombine.low %v271, %v278
    %v281 = vadd.f32 %v116, %v279
    %v282 = vmul.f32 %v281, 0.5
    %v283 = vtanh.pop %v282
    %v284 = vadd.f32 %v283, 1.0
    %v285 = vmul.f32 %v284, 0.5
    %v287 = vrot.slane %v281, 6
    %v289 = vtanh.pop %v287
    %v291 = vrot.slane %v285, 2
    %v293 = vmul.f32 %v291, %v115
    %v294 = vmul.f32 %v285, %v289
    %v295 = vadd.f32 %v293, %v294
    %v296 = vtanh.pop %v295
    %v297 = vrot.slane %v285, 4
    %v299 = vmul.f32 %v297, %v296
    %300 = vst [vmem:[#allocation9] sm:$0x3] %v299
    %s301 = scalar_lea.vmem [#allocation4], 8
    %v302 = vld [vmem:[%s301] sm:$0xff]
    %303 = vmatprep.subr.mxu0 %v51
    %304 = vmatpush1.msra.mxu0 %v50
    %305 = vmatprep.subr.mxu0 %v55
    %306 = vmatpush1.msra.mxu0 %v54
    %307 = vmatprep.subr.mxu0 %v59
    %308 = vmatpush1.msra.mxu0 %v58
    %309 = vmatprep.subr.mxu0 %v63
    %310 = vmatpush1.msra.mxu0 %v62
    %311 = vmatprep.subr.mxu0 %v67
    %312 = vmatpush1.msra.mxu0 %v66
    %313 = vmatprep.subr.mxu0 %v71
    %314 = vmatpush1.msra.mxu0 %v70
    %315 = vmatprep.subr.mxu0 %v75
    %316 = vmatpush1.msra.mxu0 %v74
    %317 = vmatprep.subr.mxu0 %v79
    %318 = vmatpush1.msra.mxu0 %v78
    %319 = vmatprep.subr.mxu0 %v83
    %320 = vmatpush1.msra.mxu0 %v82
    %321 = vmatprep.subr.mxu0 %v87
    %322 = vmatpush1.msra.mxu0 %v86
    %323 = vmatprep.subr.mxu0 %v91
    %324 = vmatpush1.msra.mxu0 %v90
    %325 = vmatprep.subr.mxu0 %v95
    %326 = vmatpush1.msra.mxu0 %v94
    %327 = vmatprep.subr.mxu0 %v99
    %328 = vmatpush1.msra.mxu0 %v98
    %329 = vmatprep.subr.mxu0 %v103
    %330 = vmatpush1.msra.mxu0 %v102
    %331 = vmatprep.subr.mxu0 %v107
    %332 = vmatpush1.msra.mxu0 %v106
    %333 = vmatprep.subr.mxu0 %v111
    %334 = vmatpush1.msra.mxu0 %v110
    %335 = vmatprep.subr.mxu0 0.0
    %336 = vmatpush1.msra.mxu0 0.0
    %337 = vmatprep.subr.mxu0 0.0
    %338 = vmatpush1.msra.mxu0 0.0
    %339 = vmatprep.subr.mxu0 0.0
    %340 = vmatpush1.msra.mxu0 0.0
    %341 = vmatprep.subr.mxu0 0.0
    %342 = vmatpush1.msra.mxu0 0.0
    %343 = vmatprep.subr.mxu0 0.0
    %344 = vmatpush1.msra.mxu0 0.0
    %345 = vmatprep.subr.mxu0 0.0
    %346 = vmatpush1.msra.mxu0 0.0
    %347 = vmatprep.subr.mxu0 0.0
    %348 = vmatpush1.msra.mxu0 0.0
    %349 = vmatprep.subr.mxu0 0.0
    %350 = vmatpush1.msra.mxu0 0.0
    %351 = vmatprep.subr.mxu0 0.0
    %352 = vmatpush1.msra.mxu0 0.0
    %353 = vmatprep.subr.mxu0 0.0
    %354 = vmatpush1.msra.mxu0 0.0
    %355 = vmatprep.subr.mxu0 0.0
    %356 = vmatpush1.msra.mxu0 0.0
    %357 = vmatprep.subr.mxu0 0.0
    %358 = vmatpush1.msra.mxu0 0.0
    %359 = vmatprep.subr.mxu0 0.0
    %360 = vmatpush1.msra.mxu0 0.0
    %361 = vmatprep.subr.mxu0 0.0
    %362 = vmatpush1.msra.mxu0 0.0
    %363 = vmatprep.subr.mxu0 0.0
    %364 = vmatpush1.msra.mxu0 0.0
    %365 = vmatprep.subr.mxu0 0.0
    %366 = vmatpush1.msra.mxu0 0.0
    %367 = vmatprep.mubr.f32.mxu0 0.0
    %368 = vmatmul.mubr.f32.gmra.mrb[0].mxu0 %v299
    %v369 = vpop.f32.mrb[0].mxu0
    %v370 = vadd.f32 0.0, %v369
    %v371 = vpop.f32.mrb[0].mxu0
    %v372 = vadd.f32 0.0, %v371
    %373 = vdwg.mxu0
    %374 = vmatprep.subr.mxu0 %v53
    %375 = vmatpush1.msra.mxu0 %v52
    %376 = vmatprep.subr.mxu0 %v57
    %377 = vmatpush1.msra.mxu0 %v56
    %378 = vmatprep.subr.mxu0 %v61
    %379 = vmatpush1.msra.mxu0 %v60
    %380 = vmatprep.subr.mxu0 %v65
    %381 = vmatpush1.msra.mxu0 %v64
    %382 = vmatprep.subr.mxu0 %v69
    %383 = vmatpush1.msra.mxu0 %v68
    %384 = vmatprep.subr.mxu0 %v73
    %385 = vmatpush1.msra.mxu0 %v72
    %386 = vmatprep.subr.mxu0 %v77
    %387 = vmatpush1.msra.mxu0 %v76
    %388 = vmatprep.subr.mxu0 %v81
    %389 = vmatpush1.msra.mxu0 %v80
    %390 = vmatprep.subr.mxu0 %v85
    %391 = vmatpush1.msra.mxu0 %v84
    %392 = vmatprep.subr.mxu0 %v89
    %393 = vmatpush1.msra.mxu0 %v88
    %394 = vmatprep.subr.mxu0 %v93
    %395 = vmatpush1.msra.mxu0 %v92
    %396 = vmatprep.subr.mxu0 %v97
    %397 = vmatpush1.msra.mxu0 %v96
    %398 = vmatprep.subr.mxu0 %v101
    %399 = vmatpush1.msra.mxu0 %v100
    %400 = vmatprep.subr.mxu0 %v105
    %401 = vmatpush1.msra.mxu0 %v104
    %402 = vmatprep.subr.mxu0 %v109
    %403 = vmatpush1.msra.mxu0 %v108
    %404 = vmatprep.subr.mxu0 %v113
    %405 = vmatpush1.msra.mxu0 %v112
    %406 = vmatprep.subr.mxu0 0.0
    %407 = vmatpush1.msra.mxu0 0.0
    %408 = vmatprep.subr.mxu0 0.0
    %409 = vmatpush1.msra.mxu0 0.0
    %410 = vmatprep.subr.mxu0 0.0
    %411 = vmatpush1.msra.mxu0 0.0
    %412 = vmatprep.subr.mxu0 0.0
    %413 = vmatpush1.msra.mxu0 0.0
    %414 = vmatprep.subr.mxu0 0.0
    %415 = vmatpush1.msra.mxu0 0.0
    %416 = vmatprep.subr.mxu0 0.0
    %417 = vmatpush1.msra.mxu0 0.0
    %418 = vmatprep.subr.mxu0 0.0
    %419 = vmatpush1.msra.mxu0 0.0
    %420 = vmatprep.subr.mxu0 0.0
    %421 = vmatpush1.msra.mxu0 0.0
    %422 = vmatprep.subr.mxu0 0.0
    %423 = vmatpush1.msra.mxu0 0.0
    %424 = vmatprep.subr.mxu0 0.0
    %425 = vmatpush1.msra.mxu0 0.0
    %426 = vmatprep.subr.mxu0 0.0
    %427 = vmatpush1.msra.mxu0 0.0
    %428 = vmatprep.subr.mxu0 0.0
    %429 = vmatpush1.msra.mxu0 0.0
    %430 = vmatprep.subr.mxu0 0.0
    %431 = vmatpush1.msra.mxu0 0.0
    %432 = vmatprep.subr.mxu0 0.0
    %433 = vmatpush1.msra.mxu0 0.0
    %434 = vmatprep.subr.mxu0 0.0
    %435 = vmatpush1.msra.mxu0 0.0
    %436 = vmatprep.subr.mxu0 0.0
    %437 = vmatpush1.msra.mxu0 0.0
    %438 = vmatprep.mubr.f32.mxu0 0.0
    %439 = vmatmul.mubr.f32.gmra.mrb[0].mxu0 %v299
    %v440 = vpop.f32.mrb[0].mxu0
    %v441 = vadd.f32 0.0, %v440
    %v442 = vpop.f32.mrb[0].mxu0
    %v443 = vadd.f32 0.0, %v442
    %444 = vdwg.mxu0
    %v449 = vcombine.low %v370, %v372
    %v450 = vcombine.low %v441, %v443
    %v452 = vunpack.c.l.s4 1983009808
    %v453 = vunpack.c.0.s8 %v452
    %v454 = vlaneseq
    %v455 = vshrl.u32 %v454, 7
    %v456 = vsub.s32 %v453, %v455
    %v457 = vrot.slane %v449, %v456
    %v459 = vunpack.c.l.s4 1983009808
    %v460 = vunpack.c.0.s8 %v459
    %v461 = vlaneseq
    %v462 = vshrl.u32 %v461, 7
    %v463 = vsub.s32 %v460, %v462
    %v464 = vrot.slane %v450, %v463
    %v465 = vcombine.low %v457, %v464
    %v467 = vadd.f32 %v302, %v465
    %v468 = vmul.f32 %v467, 0.5
    %v469 = vtanh.pop %v468
    %v470 = vadd.f32 %v469, 1.0
    %v471 = vmul.f32 %v470, 0.5
    %v473 = vrot.slane %v467, 6
    %v475 = vtanh.pop %v473
    %v477 = vrot.slane %v471, 2
    %v479 = vmul.f32 %v477, %v295
    %v480 = vmul.f32 %v471, %v475
    %v481 = vadd.f32 %v479, %v480
    %v482 = vtanh.pop %v481
    %v483 = vrot.slane %v471, 4
    %v485 = vmul.f32 %v483, %v482
    %s486 = scalar_lea.vmem [#allocation9], 2
    %487 = vst [vmem:[%s486] sm:$0x3] %v485
    %s488 = scalar_lea.vmem [#allocation4], 16
    %v489 = vld [vmem:[%s488] sm:$0xff]
    %490 = vmatprep.subr.mxu0 %v51
    %491 = vmatpush1.msra.mxu0 %v50
    %492 = vmatprep.subr.mxu0 %v55
    %493 = vmatpush1.msra.mxu0 %v54
    %494 = vmatprep.subr.mxu0 %v59
    %495 = vmatpush1.msra.mxu0 %v58
    %496 = vmatprep.subr.mxu0 %v63
    %497 = vmatpush1.msra.mxu0 %v62
    %498 = vmatprep.subr.mxu0 %v67
    %499 = vmatpush1.msra.mxu0 %v66
    %500 = vmatprep.subr.mxu0 %v71
    %501 = vmatpush1.msra.mxu0 %v70
    %502 = vmatprep.subr.mxu0 %v75
    %503 = vmatpush1.msra.mxu0 %v74
    %504 = vmatprep.subr.mxu0 %v79
    %505 = vmatpush1.msra.mxu0 %v78
    %506 = vmatprep.subr.mxu0 %v83
    %507 = vmatpush1.msra.mxu0 %v82
    %508 = vmatprep.subr.mxu0 %v87
    %509 = vmatpush1.msra.mxu0 %v86
    %510 = vmatprep.subr.mxu0 %v91
    %511 = vmatpush1.msra.mxu0 %v90
    %512 = vmatprep.subr.mxu0 %v95
    %513 = vmatpush1.msra.mxu0 %v94
    %514 = vmatprep.subr.mxu0 %v99
    %515 = vmatpush1.msra.mxu0 %v98
    %516 = vmatprep.subr.mxu0 %v103
    %517 = vmatpush1.msra.mxu0 %v102
    %518 = vmatprep.subr.mxu0 %v107
    %519 = vmatpush1.msra.mxu0 %v106
    %520 = vmatprep.subr.mxu0 %v111
    %521 = vmatpush1.msra.mxu0 %v110
    %522 = vmatprep.subr.mxu0 0.0
    %523 = vmatpush1.msra.mxu0 0.0
    %524 = vmatprep.subr.mxu0 0.0
    %525 = vmatpush1.msra.mxu0 0.0
    %526 = vmatprep.subr.mxu0 0.0
    %527 = vmatpush1.msra.mxu0 0.0
    %528 = vmatprep.subr.mxu0 0.0
    %529 = vmatpush1.msra.mxu0 0.0
    %530 = vmatprep.subr.mxu0 0.0
    %531 = vmatpush1.msra.mxu0 0.0
    %532 = vmatprep.subr.mxu0 0.0
    %533 = vmatpush1.msra.mxu0 0.0
    %534 = vmatprep.subr.mxu0 0.0
    %535 = vmatpush1.msra.mxu0 0.0
    %536 = vmatprep.subr.mxu0 0.0
    %537 = vmatpush1.msra.mxu0 0.0
    %538 = vmatprep.subr.mxu0 0.0
    %539 = vmatpush1.msra.mxu0 0.0
    %540 = vmatprep.subr.mxu0 0.0
    %541 = vmatpush1.msra.mxu0 0.0
    %542 = vmatprep.subr.mxu0 0.0
    %543 = vmatpush1.msra.mxu0 0.0
    %544 = vmatprep.subr.mxu0 0.0
    %545 = vmatpush1.msra.mxu0 0.0
    %546 = vmatprep.subr.mxu0 0.0
    %547 = vmatpush1.msra.mxu0 0.0
    %548 = vmatprep.subr.mxu0 0.0
    %549 = vmatpush1.msra.mxu0 0.0
    %550 = vmatprep.subr.mxu0 0.0
    %551 = vmatpush1.msra.mxu0 0.0
    %552 = vmatprep.subr.mxu0 0.0
    %553 = vmatpush1.msra.mxu0 0.0
    %554 = vmatprep.mubr.f32.mxu0 0.0
    %555 = vmatmul.mubr.f32.gmra.mrb[0].mxu0 %v485
    %v556 = vpop.f32.mrb[0].mxu0
    %v557 = vadd.f32 0.0, %v556
    %v558 = vpop.f32.mrb[0].mxu0
    %v559 = vadd.f32 0.0, %v558
    %560 = vdwg.mxu0
    %561 = vmatprep.subr.mxu0 %v53
    %562 = vmatpush1.msra.mxu0 %v52
    %563 = vmatprep.subr.mxu0 %v57
    %564 = vmatpush1.msra.mxu0 %v56
    %565 = vmatprep.subr.mxu0 %v61
    %566 = vmatpush1.msra.mxu0 %v60
    %567 = vmatprep.subr.mxu0 %v65
    %568 = vmatpush1.msra.mxu0 %v64
    %569 = vmatprep.subr.mxu0 %v69
    %570 = vmatpush1.msra.mxu0 %v68
    %571 = vmatprep.subr.mxu0 %v73
    %572 = vmatpush1.msra.mxu0 %v72
    %573 = vmatprep.subr.mxu0 %v77
    %574 = vmatpush1.msra.mxu0 %v76
    %575 = vmatprep.subr.mxu0 %v81
    %576 = vmatpush1.msra.mxu0 %v80
    %577 = vmatprep.subr.mxu0 %v85
    %578 = vmatpush1.msra.mxu0 %v84
    %579 = vmatprep.subr.mxu0 %v89
    %580 = vmatpush1.msra.mxu0 %v88
    %581 = vmatprep.subr.mxu0 %v93
    %582 = vmatpush1.msra.mxu0 %v92
    %583 = vmatprep.subr.mxu0 %v97
    %584 = vmatpush1.msra.mxu0 %v96
    %585 = vmatprep.subr.mxu0 %v101
    %586 = vmatpush1.msra.mxu0 %v100
    %587 = vmatprep.subr.mxu0 %v105
    %588 = vmatpush1.msra.mxu0 %v104
    %589 = vmatprep.subr.mxu0 %v109
    %590 = vmatpush1.msra.mxu0 %v108
    %591 = vmatprep.subr.mxu0 %v113
    %592 = vmatpush1.msra.mxu0 %v112
    %593 = vmatprep.subr.mxu0 0.0
    %594 = vmatpush1.msra.mxu0 0.0
    %595 = vmatprep.subr.mxu0 0.0
    %596 = vmatpush1.msra.mxu0 0.0
    %597 = vmatprep.subr.mxu0 0.0
    %598 = vmatpush1.msra.mxu0 0.0
    %599 = vmatprep.subr.mxu0 0.0
    %600 = vmatpush1.msra.mxu0 0.0
    %601 = vmatprep.subr.mxu0 0.0
    %602 = vmatpush1.msra.mxu0 0.0
    %603 = vmatprep.subr.mxu0 0.0
    %604 = vmatpush1.msra.mxu0 0.0
    %605 = vmatprep.subr.mxu0 0.0
    %606 = vmatpush1.msra.mxu0 0.0
    %607 = vmatprep.subr.mxu0 0.0
    %608 = vmatpush1.msra.mxu0 0.0
    %609 = vmatprep.subr.mxu0 0.0
    %610 = vmatpush1.msra.mxu0 0.0
    %611 = vmatprep.subr.mxu0 0.0
    %612 = vmatpush1.msra.mxu0 0.0
    %613 = vmatprep.subr.mxu0 0.0
    %614 = vmatpush1.msra.mxu0 0.0
    %615 = vmatprep.subr.mxu0 0.0
    %616 = vmatpush1.msra.mxu0 0.0
    %617 = vmatprep.subr.mxu0 0.0
    %618 = vmatpush1.msra.mxu0 0.0
    %619 = vmatprep.subr.mxu0 0.0
    %620 = vmatpush1.msra.mxu0 0.0
    %621 = vmatprep.subr.mxu0 0.0
    %622 = vmatpush1.msra.mxu0 0.0
    %623 = vmatprep.subr.mxu0 0.0
    %624 = vmatpush1.msra.mxu0 0.0
    %625 = vmatprep.mubr.f32.mxu0 0.0
    %626 = vmatmul.mubr.f32.gmra.mrb[0].mxu0 %v485
    %v627 = vpop.f32.mrb[0].mxu0
    %v628 = vadd.f32 0.0, %v627
    %v629 = vpop.f32.mrb[0].mxu0
    %v630 = vadd.f32 0.0, %v629
    %631 = vdwg.mxu0
    %v636 = vcombine.low %v557, %v559
    %v637 = vcombine.low %v628, %v630
    %v639 = vunpack.c.l.s4 1983009808
    %v640 = vunpack.c.0.s8 %v639
    %v641 = vlaneseq
    %v642 = vshrl.u32 %v641, 7
    %v643 = vsub.s32 %v640, %v642
    %v644 = vrot.slane %v636, %v643
    %v646 = vunpack.c.l.s4 1983009808
    %v647 = vunpack.c.0.s8 %v646
    %v648 = vlaneseq
    %v649 = vshrl.u32 %v648, 7
    %v650 = vsub.s32 %v647, %v649
    %v651 = vrot.slane %v637, %v650
    %v652 = vcombine.low %v644, %v651
    %v654 = vadd.f32 %v489, %v652
    %v655 = vmul.f32 %v654, 0.5
    %v656 = vtanh.pop %v655
    %v657 = vadd.f32 %v656, 1.0
    %v658 = vmul.f32 %v657, 0.5
    %v660 = vrot.slane %v654, 6
    %v662 = vtanh.pop %v660
    %v664 = vrot.slane %v658, 2
    %v666 = vmul.f32 %v664, %v481
    %v667 = vmul.f32 %v658, %v662
    %v668 = vadd.f32 %v666, %v667
    %v669 = vtanh.pop %v668
    %v670 = vrot.slane %v658, 4
    %v672 = vmul.f32 %v670, %v669
    %s673 = scalar_lea.vmem [#allocation9], 4
    %674 = vst [vmem:[%s673] sm:$0x3] %v672
    %s675 = scalar_lea.vmem [#allocation4], 24
    %v676 = vld [vmem:[%s675] sm:$0xff]
    %677 = vmatprep.subr.mxu0 %v51
    %678 = vmatpush1.msra.mxu0 %v50
    %679 = vmatprep.subr.mxu0 %v55
    %680 = vmatpush1.msra.mxu0 %v54
    %681 = vmatprep.subr.mxu0 %v59
    %682 = vmatpush1.msra.mxu0 %v58
    %683 = vmatprep.subr.mxu0 %v63
    %684 = vmatpush1.msra.mxu0 %v62
    %685 = vmatprep.subr.mxu0 %v67
    %686 = vmatpush1.msra.mxu0 %v66
    %687 = vmatprep.subr.mxu0 %v71
    %688 = vmatpush1.msra.mxu0 %v70
    %689 = vmatprep.subr.mxu0 %v75
    %690 = vmatpush1.msra.mxu0 %v74
    %691 = vmatprep.subr.mxu0 %v79
    %692 = vmatpush1.msra.mxu0 %v78
    %693 = vmatprep.subr.mxu0 %v83
    %694 = vmatpush1.msra.mxu0 %v82
    %695 = vmatprep.subr.mxu0 %v87
    %696 = vmatpush1.msra.mxu0 %v86
    %697 = vmatprep.subr.mxu0 %v91
    %698 = vmatpush1.msra.mxu0 %v90
    %699 = vmatprep.subr.mxu0 %v95
    %700 = vmatpush1.msra.mxu0 %v94
    %701 = vmatprep.subr.mxu0 %v99
    %702 = vmatpush1.msra.mxu0 %v98
    %703 = vmatprep.subr.mxu0 %v103
    %704 = vmatpush1.msra.mxu0 %v102
    %705 = vmatprep.subr.mxu0 %v107
    %706 = vmatpush1.msra.mxu0 %v106
    %707 = vmatprep.subr.mxu0 %v111
    %708 = vmatpush1.msra.mxu0 %v110
    %709 = vmatprep.subr.mxu0 0.0
    %710 = vmatpush1.msra.mxu0 0.0
    %711 = vmatprep.subr.mxu0 0.0
    %712 = vmatpush1.msra.mxu0 0.0
    %713 = vmatprep.subr.mxu0 0.0
    %714 = vmatpush1.msra.mxu0 0.0
    %715 = vmatprep.subr.mxu0 0.0
    %716 = vmatpush1.msra.mxu0 0.0
    %717 = vmatprep.subr.mxu0 0.0
    %718 = vmatpush1.msra.mxu0 0.0
    %719 = vmatprep.subr.mxu0 0.0
    %720 = vmatpush1.msra.mxu0 0.0
    %721 = vmatprep.subr.mxu0 0.0
    %722 = vmatpush1.msra.mxu0 0.0
    %723 = vmatprep.subr.mxu0 0.0
    %724 = vmatpush1.msra.mxu0 0.0
    %725 = vmatprep.subr.mxu0 0.0
    %726 = vmatpush1.msra.mxu0 0.0
    %727 = vmatprep.subr.mxu0 0.0
    %728 = vmatpush1.msra.mxu0 0.0
    %729 = vmatprep.subr.mxu0 0.0
    %730 = vmatpush1.msra.mxu0 0.0
    %731 = vmatprep.subr.mxu0 0.0
    %732 = vmatpush1.msra.mxu0 0.0
    %733 = vmatprep.subr.mxu0 0.0
    %734 = vmatpush1.msra.mxu0 0.0
    %735 = vmatprep.subr.mxu0 0.0
    %736 = vmatpush1.msra.mxu0 0.0
    %737 = vmatprep.subr.mxu0 0.0
    %738 = vmatpush1.msra.mxu0 0.0
    %739 = vmatprep.subr.mxu0 0.0
    %740 = vmatpush1.msra.mxu0 0.0
    %741 = vmatprep.mubr.f32.mxu0 0.0
    %742 = vmatmul.mubr.f32.gmra.mrb[0].mxu0 %v672
    %v743 = vpop.f32.mrb[0].mxu0
    %v744 = vadd.f32 0.0, %v743
    %v745 = vpop.f32.mrb[0].mxu0
    %v746 = vadd.f32 0.0, %v745
    %747 = vdwg.mxu0
    %748 = vmatprep.subr.mxu0 %v53
    %749 = vmatpush1.msra.mxu0 %v52
    %750 = vmatprep.subr.mxu0 %v57
    %751 = vmatpush1.msra.mxu0 %v56
    %752 = vmatprep.subr.mxu0 %v61
    %753 = vmatpush1.msra.mxu0 %v60
    %754 = vmatprep.subr.mxu0 %v65
    %755 = vmatpush1.msra.mxu0 %v64
    %756 = vmatprep.subr.mxu0 %v69
    %757 = vmatpush1.msra.mxu0 %v68
    %758 = vmatprep.subr.mxu0 %v73
    %759 = vmatpush1.msra.mxu0 %v72
    %760 = vmatprep.subr.mxu0 %v77
    %761 = vmatpush1.msra.mxu0 %v76
    %762 = vmatprep.subr.mxu0 %v81
    %763 = vmatpush1.msra.mxu0 %v80
    %764 = vmatprep.subr.mxu0 %v85
    %765 = vmatpush1.msra.mxu0 %v84
    %766 = vmatprep.subr.mxu0 %v89
    %767 = vmatpush1.msra.mxu0 %v88
    %768 = vmatprep.subr.mxu0 %v93
    %769 = vmatpush1.msra.mxu0 %v92
    %770 = vmatprep.subr.mxu0 %v97
    %771 = vmatpush1.msra.mxu0 %v96
    %772 = vmatprep.subr.mxu0 %v101
    %773 = vmatpush1.msra.mxu0 %v100
    %774 = vmatprep.subr.mxu0 %v105
    %775 = vmatpush1.msra.mxu0 %v104
    %776 = vmatprep.subr.mxu0 %v109
    %777 = vmatpush1.msra.mxu0 %v108
    %778 = vmatprep.subr.mxu0 %v113
    %779 = vmatpush1.msra.mxu0 %v112
    %780 = vmatprep.subr.mxu0 0.0
    %781 = vmatpush1.msra.mxu0 0.0
    %782 = vmatprep.subr.mxu0 0.0
    %783 = vmatpush1.msra.mxu0 0.0
    %784 = vmatprep.subr.mxu0 0.0
    %785 = vmatpush1.msra.mxu0 0.0
    %786 = vmatprep.subr.mxu0 0.0
    %787 = vmatpush1.msra.mxu0 0.0
    %788 = vmatprep.subr.mxu0 0.0
    %789 = vmatpush1.msra.mxu0 0.0
    %790 = vmatprep.subr.mxu0 0.0
    %791 = vmatpush1.msra.mxu0 0.0
    %792 = vmatprep.subr.mxu0 0.0
    %793 = vmatpush1.msra.mxu0 0.0
    %794 = vmatprep.subr.mxu0 0.0
    %795 = vmatpush1.msra.mxu0 0.0
    %796 = vmatprep.subr.mxu0 0.0
    %797 = vmatpush1.msra.mxu0 0.0
    %798 = vmatprep.subr.mxu0 0.0
    %799 = vmatpush1.msra.mxu0 0.0
    %800 = vmatprep.subr.mxu0 0.0
    %801 = vmatpush1.msra.mxu0 0.0
    %802 = vmatprep.subr.mxu0 0.0
    %803 = vmatpush1.msra.mxu0 0.0
    %804 = vmatprep.subr.mxu0 0.0
    %805 = vmatpush1.msra.mxu0 0.0
    %806 = vmatprep.subr.mxu0 0.0
    %807 = vmatpush1.msra.mxu0 0.0
    %808 = vmatprep.subr.mxu0 0.0
    %809 = vmatpush1.msra.mxu0 0.0
    %810 = vmatprep.subr.mxu0 0.0
    %811 = vmatpush1.msra.mxu0 0.0
    %812 = vmatprep.mubr.f32.mxu0 0.0
    %813 = vmatmul.mubr.f32.gmra.mrb[0].mxu0 %v672
    %v814 = vpop.f32.mrb[0].mxu0
    %v815 = vadd.f32 0.0, %v814
    %v816 = vpop.f32.mrb[0].mxu0
    %v817 = vadd.f32 0.0, %v816
    %818 = vdwg.mxu0
    %v823 = vcombine.low %v744, %v746
    %v824 = vcombine.low %v815, %v817
    %v826 = vunpack.c.l.s4 1983009808
    %v827 = vunpack.c.0.s8 %v826
    %v828 = vlaneseq
    %v829 = vshrl.u32 %v828, 7
    %v830 = vsub.s32 %v827, %v829
    %v831 = vrot.slane %v823, %v830
    %v833 = vunpack.c.l.s4 1983009808
    %v834 = vunpack.c.0.s8 %v833
    %v835 = vlaneseq
    %v836 = vshrl.u32 %v835, 7
    %v837 = vsub.s32 %v834, %v836
    %v838 = vrot.slane %v824, %v837
    %v839 = vcombine.low %v831, %v838
    %v841 = vadd.f32 %v676, %v839
    %v842 = vmul.f32 %v841, 0.5
    %v843 = vtanh.pop %v842
    %v844 = vadd.f32 %v843, 1.0
    %v845 = vmul.f32 %v844, 0.5
    %v847 = vrot.slane %v841, 6
    %v849 = vtanh.pop %v847
    %v851 = vrot.slane %v845, 2
    %v853 = vmul.f32 %v851, %v668
    %v854 = vmul.f32 %v845, %v849
    %v855 = vadd.f32 %v853, %v854
    %v856 = vtanh.pop %v855
    %v857 = vrot.slane %v845, 4
    %v859 = vmul.f32 %v857, %v856
    %s860 = scalar_lea.vmem [#allocation9], 6
    %861 = vst [vmem:[%s860] sm:$0x3] %v859
    %s862 = scalar_lea.vmem [#allocation4], 32
    %v863 = vld [vmem:[%s862] sm:$0xff]
    %864 = vmatprep.subr.mxu0 %v51
    %865 = vmatpush1.msra.mxu0 %v50
    %866 = vmatprep.subr.mxu0 %v55
    %867 = vmatpush1.msra.mxu0 %v54
    %868 = vmatprep.subr.mxu0 %v59
    %869 = vmatpush1.msra.mxu0 %v58
    %870 = vmatprep.subr.mxu0 %v63
    %871 = vmatpush1.msra.mxu0 %v62
    %872 = vmatprep.subr.mxu0 %v67
    %873 = vmatpush1.msra.mxu0 %v66
    %874 = vmatprep.subr.mxu0 %v71
    %875 = vmatpush1.msra.mxu0 %v70
    %876 = vmatprep.subr.mxu0 %v75
    %877 = vmatpush1.msra.mxu0 %v74
    %878 = vmatprep.subr.mxu0 %v79
    %879 = vmatpush1.msra.mxu0 %v78
    %880 = vmatprep.subr.mxu0 %v83
    %881 = vmatpush1.msra.mxu0 %v82
    %882 = vmatprep.subr.mxu0 %v87
    %883 = vmatpush1.msra.mxu0 %v86
    %884 = vmatprep.subr.mxu0 %v91
    %885 = vmatpush1.msra.mxu0 %v90
    %886 = vmatprep.subr.mxu0 %v95
    %887 = vmatpush1.msra.mxu0 %v94
    %888 = vmatprep.subr.mxu0 %v99
    %889 = vmatpush1.msra.mxu0 %v98
    %890 = vmatprep.subr.mxu0 %v103
    %891 = vmatpush1.msra.mxu0 %v102
    %892 = vmatprep.subr.mxu0 %v107
    %893 = vmatpush1.msra.mxu0 %v106
    %894 = vmatprep.subr.mxu0 %v111
    %895 = vmatpush1.msra.mxu0 %v110
    %896 = vmatprep.subr.mxu0 0.0
    %897 = vmatpush1.msra.mxu0 0.0
    %898 = vmatprep.subr.mxu0 0.0
    %899 = vmatpush1.msra.mxu0 0.0
    %900 = vmatprep.subr.mxu0 0.0
    %901 = vmatpush1.msra.mxu0 0.0
    %902 = vmatprep.subr.mxu0 0.0
    %903 = vmatpush1.msra.mxu0 0.0
    %904 = vmatprep.subr.mxu0 0.0
    %905 = vmatpush1.msra.mxu0 0.0
    %906 = vmatprep.subr.mxu0 0.0
    %907 = vmatpush1.msra.mxu0 0.0
    %908 = vmatprep.subr.mxu0 0.0
    %909 = vmatpush1.msra.mxu0 0.0
    %910 = vmatprep.subr.mxu0 0.0
    %911 = vmatpush1.msra.mxu0 0.0
    %912 = vmatprep.subr.mxu0 0.0
    %913 = vmatpush1.msra.mxu0 0.0
    %914 = vmatprep.subr.mxu0 0.0
    %915 = vmatpush1.msra.mxu0 0.0
    %916 = vmatprep.subr.mxu0 0.0
    %917 = vmatpush1.msra.mxu0 0.0
    %918 = vmatprep.subr.mxu0 0.0
    %919 = vmatpush1.msra.mxu0 0.0
    %920 = vmatprep.subr.mxu0 0.0
    %921 = vmatpush1.msra.mxu0 0.0
    %922 = vmatprep.subr.mxu0 0.0
    %923 = vmatpush1.msra.mxu0 0.0
    %924 = vmatprep.subr.mxu0 0.0
    %925 = vmatpush1.msra.mxu0 0.0
    %926 = vmatprep.subr.mxu0 0.0
    %927 = vmatpush1.msra.mxu0 0.0
    %928 = vmatprep.mubr.f32.mxu0 0.0
    %929 = vmatmul.mubr.f32.gmra.mrb[0].mxu0 %v859
    %v930 = vpop.f32.mrb[0].mxu0
    %v931 = vadd.f32 0.0, %v930
    %v932 = vpop.f32.mrb[0].mxu0
    %v933 = vadd.f32 0.0, %v932
    %934 = vdwg.mxu0
    %935 = vmatprep.subr.mxu0 %v53
    %936 = vmatpush1.msra.mxu0 %v52
    %937 = vmatprep.subr.mxu0 %v57
    %938 = vmatpush1.msra.mxu0 %v56
    %939 = vmatprep.subr.mxu0 %v61
    %940 = vmatpush1.msra.mxu0 %v60
    %941 = vmatprep.subr.mxu0 %v65
    %942 = vmatpush1.msra.mxu0 %v64
    %943 = vmatprep.subr.mxu0 %v69
    %944 = vmatpush1.msra.mxu0 %v68
    %945 = vmatprep.subr.mxu0 %v73
    %946 = vmatpush1.msra.mxu0 %v72
    %947 = vmatprep.subr.mxu0 %v77
    %948 = vmatpush1.msra.mxu0 %v76
    %949 = vmatprep.subr.mxu0 %v81
    %950 = vmatpush1.msra.mxu0 %v80
    %951 = vmatprep.subr.mxu0 %v85
    %952 = vmatpush1.msra.mxu0 %v84
    %953 = vmatprep.subr.mxu0 %v89
    %954 = vmatpush1.msra.mxu0 %v88
    %955 = vmatprep.subr.mxu0 %v93
    %956 = vmatpush1.msra.mxu0 %v92
    %957 = vmatprep.subr.mxu0 %v97
    %958 = vmatpush1.msra.mxu0 %v96
    %959 = vmatprep.subr.mxu0 %v101
    %960 = vmatpush1.msra.mxu0 %v100
    %961 = vmatprep.subr.mxu0 %v105
    %962 = vmatpush1.msra.mxu0 %v104
    %963 = vmatprep.subr.mxu0 %v109
    %964 = vmatpush1.msra.mxu0 %v108
    %965 = vmatprep.subr.mxu0 %v113
    %966 = vmatpush1.msra.mxu0 %v112
    %967 = vmatprep.subr.mxu0 0.0
    %968 = vmatpush1.msra.mxu0 0.0
    %969 = vmatprep.subr.mxu0 0.0
    %970 = vmatpush1.msra.mxu0 0.0
    %971 = vmatprep.subr.mxu0 0.0
    %972 = vmatpush1.msra.mxu0 0.0
    %973 = vmatprep.subr.mxu0 0.0
    %974 = vmatpush1.msra.mxu0 0.0
    %975 = vmatprep.subr.mxu0 0.0
    %976 = vmatpush1.msra.mxu0 0.0
    %977 = vmatprep.subr.mxu0 0.0
    %978 = vmatpush1.msra.mxu0 0.0
    %979 = vmatprep.subr.mxu0 0.0
    %980 = vmatpush1.msra.mxu0 0.0
    %981 = vmatprep.subr.mxu0 0.0
    %982 = vmatpush1.msra.mxu0 0.0
    %983 = vmatprep.subr.mxu0 0.0
    %984 = vmatpush1.msra.mxu0 0.0
    %985 = vmatprep.subr.mxu0 0.0
    %986 = vmatpush1.msra.mxu0 0.0
    %987 = vmatprep.subr.mxu0 0.0
    %988 = vmatpush1.msra.mxu0 0.0
    %989 = vmatprep.subr.mxu0 0.0
    %990 = vmatpush1.msra.mxu0 0.0
    %991 = vmatprep.subr.mxu0 0.0
    %992 = vmatpush1.msra.mxu0 0.0
    %993 = vmatprep.subr.mxu0 0.0
    %994 = vmatpush1.msra.mxu0 0.0
    %995 = vmatprep.subr.mxu0 0.0
    %996 = vmatpush1.msra.mxu0 0.0
    %997 = vmatprep.subr.mxu0 0.0
    %998 = vmatpush1.msra.mxu0 0.0
    %999 = vmatprep.mubr.f32.mxu0 0.0
    %1000 = vmatmul.mubr.f32.gmra.mrb[0].mxu0 %v859
    %v1001 = vpop.f32.mrb[0].mxu0
    %v1002 = vadd.f32 0.0, %v1001
    %v1003 = vpop.f32.mrb[0].mxu0
    %v1004 = vadd.f32 0.0, %v1003
    %1005 = vdwg.mxu0
    %v1010 = vcombine.low %v931, %v933
    %v1011 = vcombine.low %v1002, %v1004
    %v1013 = vunpack.c.l.s4 1983009808
    %v1014 = vunpack.c.0.s8 %v1013
    %v1015 = vlaneseq
    %v1016 = vshrl.u32 %v1015, 7
    %v1017 = vsub.s32 %v1014, %v1016
    %v1018 = vrot.slane %v1010, %v1017
    %v1020 = vunpack.c.l.s4 1983009808
    %v1021 = vunpack.c.0.s8 %v1020
    %v1022 = vlaneseq
    %v1023 = vshrl.u32 %v1022, 7
    %v1024 = vsub.s32 %v1021, %v1023
    %v1025 = vrot.slane %v1011, %v1024
    %v1026 = vcombine.low %v1018, %v1025
    %v1028 = vadd.f32 %v863, %v1026
    %v1029 = vmul.f32 %v1028, 0.5
    %v1030 = vtanh.pop %v1029
    %v1031 = vadd.f32 %v1030, 1.0
    %v1032 = vmul.f32 %v1031, 0.5
    %v1034 = vrot.slane %v1028, 6
    %v1036 = vtanh.pop %v1034
    %v1038 = vrot.slane %v1032, 2
    %v1040 = vmul.f32 %v1038, %v855
    %v1041 = vmul.f32 %v1032, %v1036
    %v1042 = vadd.f32 %v1040, %v1041
    %v1043 = vtanh.pop %v1042
    %v1044 = vrot.slane %v1032, 4
    %v1046 = vmul.f32 %v1044, %v1043
    %s1047 = scalar_lea.vmem [#allocation9], 8
    %1048 = vst [vmem:[%s1047] sm:$0x3] %v1046
    %s1049 = scalar_lea.vmem [#allocation4], 40
    %v1050 = vld [vmem:[%s1049] sm:$0xff]
    %1051 = vmatprep.subr.mxu0 %v51
    %1052 = vmatpush1.msra.mxu0 %v50
    %1053 = vmatprep.subr.mxu0 %v55
    %1054 = vmatpush1.msra.mxu0 %v54
    %1055 = vmatprep.subr.mxu0 %v59
    %1056 = vmatpush1.msra.mxu0 %v58
    %1057 = vmatprep.subr.mxu0 %v63
    %1058 = vmatpush1.msra.mxu0 %v62
    %1059 = vmatprep.subr.mxu0 %v67
    %1060 = vmatpush1.msra.mxu0 %v66
    %1061 = vmatprep.subr.mxu0 %v71
    %1062 = vmatpush1.msra.mxu0 %v70
    %1063 = vmatprep.subr.mxu0 %v75
    %1064 = vmatpush1.msra.mxu0 %v74
    %1065 = vmatprep.subr.mxu0 %v79
    %1066 = vmatpush1.msra.mxu0 %v78
    %1067 = vmatprep.subr.mxu0 %v83
    %1068 = vmatpush1.msra.mxu0 %v82
    %1069 = vmatprep.subr.mxu0 %v87
    %1070 = vmatpush1.msra.mxu0 %v86
    %1071 = vmatprep.subr.mxu0 %v91
    %1072 = vmatpush1.msra.mxu0 %v90
    %1073 = vmatprep.subr.mxu0 %v95
    %1074 = vmatpush1.msra.mxu0 %v94
    %1075 = vmatprep.subr.mxu0 %v99
    %1076 = vmatpush1.msra.mxu0 %v98
    %1077 = vmatprep.subr.mxu0 %v103
    %1078 = vmatpush1.msra.mxu0 %v102
    %1079 = vmatprep.subr.mxu0 %v107
    %1080 = vmatpush1.msra.mxu0 %v106
    %1081 = vmatprep.subr.mxu0 %v111
    %1082 = vmatpush1.msra.mxu0 %v110
    %1083 = vmatprep.subr.mxu0 0.0
    %1084 = vmatpush1.msra.mxu0 0.0
    %1085 = vmatprep.subr.mxu0 0.0
    %1086 = vmatpush1.msra.mxu0 0.0
    %1087 = vmatprep.subr.mxu0 0.0
    %1088 = vmatpush1.msra.mxu0 0.0
    %1089 = vmatprep.subr.mxu0 0.0
    %1090 = vmatpush1.msra.mxu0 0.0
    %1091 = vmatprep.subr.mxu0 0.0
    %1092 = vmatpush1.msra.mxu0 0.0
    %1093 = vmatprep.subr.mxu0 0.0
    %1094 = vmatpush1.msra.mxu0 0.0
    %1095 = vmatprep.subr.mxu0 0.0
    %1096 = vmatpush1.msra.mxu0 0.0
    %1097 = vmatprep.subr.mxu0 0.0
    %1098 = vmatpush1.msra.mxu0 0.0
    %1099 = vmatprep.subr.mxu0 0.0
    %1100 = vmatpush1.msra.mxu0 0.0
    %1101 = vmatprep.subr.mxu0 0.0
    %1102 = vmatpush1.msra.mxu0 0.0
    %1103 = vmatprep.subr.mxu0 0.0
    %1104 = vmatpush1.msra.mxu0 0.0
    %1105 = vmatprep.subr.mxu0 0.0
    %1106 = vmatpush1.msra.mxu0 0.0
    %1107 = vmatprep.subr.mxu0 0.0
    %1108 = vmatpush1.msra.mxu0 0.0
    %1109 = vmatprep.subr.mxu0 0.0
    %1110 = vmatpush1.msra.mxu0 0.0
    %1111 = vmatprep.subr.mxu0 0.0
    %1112 = vmatpush1.msra.mxu0 0.0
    %1113 = vmatprep.subr.mxu0 0.0
    %1114 = vmatpush1.msra.mxu0 0.0
    %1115 = vmatprep.mubr.f32.mxu0 0.0
    %1116 = vmatmul.mubr.f32.gmra.mrb[0].mxu0 %v1046
    %v1117 = vpop.f32.mrb[0].mxu0
    %v1118 = vadd.f32 0.0, %v1117
    %v1119 = vpop.f32.mrb[0].mxu0
    %v1120 = vadd.f32 0.0, %v1119
    %1121 = vdwg.mxu0
    %1122 = vmatprep.subr.mxu0 %v53
    %1123 = vmatpush1.msra.mxu0 %v52
    %1124 = vmatprep.subr.mxu0 %v57
    %1125 = vmatpush1.msra.mxu0 %v56
    %1126 = vmatprep.subr.mxu0 %v61
    %1127 = vmatpush1.msra.mxu0 %v60
    %1128 = vmatprep.subr.mxu0 %v65
    %1129 = vmatpush1.msra.mxu0 %v64
    %1130 = vmatprep.subr.mxu0 %v69
    %1131 = vmatpush1.msra.mxu0 %v68
    %1132 = vmatprep.subr.mxu0 %v73
    %1133 = vmatpush1.msra.mxu0 %v72
    %1134 = vmatprep.subr.mxu0 %v77
    %1135 = vmatpush1.msra.mxu0 %v76
    %1136 = vmatprep.subr.mxu0 %v81
    %1137 = vmatpush1.msra.mxu0 %v80
    %1138 = vmatprep.subr.mxu0 %v85
    %1139 = vmatpush1.msra.mxu0 %v84
    %1140 = vmatprep.subr.mxu0 %v89
    %1141 = vmatpush1.msra.mxu0 %v88
    %1142 = vmatprep.subr.mxu0 %v93
    %1143 = vmatpush1.msra.mxu0 %v92
    %1144 = vmatprep.subr.mxu0 %v97
    %1145 = vmatpush1.msra.mxu0 %v96
    %1146 = vmatprep.subr.mxu0 %v101
    %1147 = vmatpush1.msra.mxu0 %v100
    %1148 = vmatprep.subr.mxu0 %v105
    %1149 = vmatpush1.msra.mxu0 %v104
    %1150 = vmatprep.subr.mxu0 %v109
    %1151 = vmatpush1.msra.mxu0 %v108
    %1152 = vmatprep.subr.mxu0 %v113
    %1153 = vmatpush1.msra.mxu0 %v112
    %1154 = vmatprep.subr.mxu0 0.0
    %1155 = vmatpush1.msra.mxu0 0.0
    %1156 = vmatprep.subr.mxu0 0.0
    %1157 = vmatpush1.msra.mxu0 0.0
    %1158 = vmatprep.subr.mxu0 0.0
    %1159 = vmatpush1.msra.mxu0 0.0
    %1160 = vmatprep.subr.mxu0 0.0
    %1161 = vmatpush1.msra.mxu0 0.0
    %1162 = vmatprep.subr.mxu0 0.0
    %1163 = vmatpush1.msra.mxu0 0.0
    %1164 = vmatprep.subr.mxu0 0.0
    %1165 = vmatpush1.msra.mxu0 0.0
    %1166 = vmatprep.subr.mxu0 0.0
    %1167 = vmatpush1.msra.mxu0 0.0
    %1168 = vmatprep.subr.mxu0 0.0
    %1169 = vmatpush1.msra.mxu0 0.0
    %1170 = vmatprep.subr.mxu0 0.0
    %1171 = vmatpush1.msra.mxu0 0.0
    %1172 = vmatprep.subr.mxu0 0.0
    %1173 = vmatpush1.msra.mxu0 0.0
    %1174 = vmatprep.subr.mxu0 0.0
    %1175 = vmatpush1.msra.mxu0 0.0
    %1176 = vmatprep.subr.mxu0 0.0
    %1177 = vmatpush1.msra.mxu0 0.0
    %1178 = vmatprep.subr.mxu0 0.0
    %1179 = vmatpush1.msra.mxu0 0.0
    %1180 = vmatprep.subr.mxu0 0.0
    %1181 = vmatpush1.msra.mxu0 0.0
    %1182 = vmatprep.subr.mxu0 0.0
    %1183 = vmatpush1.msra.mxu0 0.0
    %1184 = vmatprep.subr.mxu0 0.0
    %1185 = vmatpush1.msra.mxu0 0.0
    %1186 = vmatprep.mubr.f32.mxu0 0.0
    %1187 = vmatmul.mubr.f32.gmra.mrb[0].mxu0 %v1046
    %v1188 = vpop.f32.mrb[0].mxu0
    %v1189 = vadd.f32 0.0, %v1188
    %v1190 = vpop.f32.mrb[0].mxu0
    %v1191 = vadd.f32 0.0, %v1190
    %1192 = vdwg.mxu0
    %v1197 = vcombine.low %v1118, %v1120
    %v1198 = vcombine.low %v1189, %v1191
    %v1200 = vunpack.c.l.s4 1983009808
    %v1201 = vunpack.c.0.s8 %v1200
    %v1202 = vlaneseq
    %v1203 = vshrl.u32 %v1202, 7
    %v1204 = vsub.s32 %v1201, %v1203
    %v1205 = vrot.slane %v1197, %v1204
    %v1207 = vunpack.c.l.s4 1983009808
    %v1208 = vunpack.c.0.s8 %v1207
    %v1209 = vlaneseq
    %v1210 = vshrl.u32 %v1209, 7
    %v1211 = vsub.s32 %v1208, %v1210
    %v1212 = vrot.slane %v1198, %v1211
    %v1213 = vcombine.low %v1205, %v1212
    %v1215 = vadd.f32 %v1050, %v1213
    %v1216 = vmul.f32 %v1215, 0.5
    %v1217 = vtanh.pop %v1216
    %v1218 = vadd.f32 %v1217, 1.0
    %v1219 = vmul.f32 %v1218, 0.5
    %v1221 = vrot.slane %v1215, 6
    %v1223 = vtanh.pop %v1221
    %v1225 = vrot.slane %v1219, 2
    %v1227 = vmul.f32 %v1225, %v1042
    %v1228 = vmul.f32 %v1219, %v1223
    %v1229 = vadd.f32 %v1227, %v1228
    %v1230 = vtanh.pop %v1229
    %v1231 = vrot.slane %v1219, 4
    %v1233 = vmul.f32 %v1231, %v1230
    %s1234 = scalar_lea.vmem [#allocation9], 10
    %1235 = vst [vmem:[%s1234] sm:$0x3] %v1233
    %s1236 = scalar_lea.vmem [#allocation4], 48
    %v1237 = vld [vmem:[%s1236] sm:$0xff]
    %1238 = vmatprep.subr.mxu0 %v51
    %1239 = vmatpush1.msra.mxu0 %v50
    %1240 = vmatprep.subr.mxu0 %v55
    %1241 = vmatpush1.msra.mxu0 %v54
    %1242 = vmatprep.subr.mxu0 %v59
    %1243 = vmatpush1.msra.mxu0 %v58
    %1244 = vmatprep.subr.mxu0 %v63
    %1245 = vmatpush1.msra.mxu0 %v62
    %1246 = vmatprep.subr.mxu0 %v67
    %1247 = vmatpush1.msra.mxu0 %v66
    %1248 = vmatprep.subr.mxu0 %v71
    %1249 = vmatpush1.msra.mxu0 %v70
    %1250 = vmatprep.subr.mxu0 %v75
    %1251 = vmatpush1.msra.mxu0 %v74
    %1252 = vmatprep.subr.mxu0 %v79
    %1253 = vmatpush1.msra.mxu0 %v78
    %1254 = vmatprep.subr.mxu0 %v83
    %1255 = vmatpush1.msra.mxu0 %v82
    %1256 = vmatprep.subr.mxu0 %v87
    %1257 = vmatpush1.msra.mxu0 %v86
    %1258 = vmatprep.subr.mxu0 %v91
    %1259 = vmatpush1.msra.mxu0 %v90
    %1260 = vmatprep.subr.mxu0 %v95
    %1261 = vmatpush1.msra.mxu0 %v94
    %1262 = vmatprep.subr.mxu0 %v99
    %1263 = vmatpush1.msra.mxu0 %v98
    %1264 = vmatprep.subr.mxu0 %v103
    %1265 = vmatpush1.msra.mxu0 %v102
    %1266 = vmatprep.subr.mxu0 %v107
    %1267 = vmatpush1.msra.mxu0 %v106
    %1268 = vmatprep.subr.mxu0 %v111
    %1269 = vmatpush1.msra.mxu0 %v110
    %1270 = vmatprep.subr.mxu0 0.0
    %1271 = vmatpush1.msra.mxu0 0.0
    %1272 = vmatprep.subr.mxu0 0.0
    %1273 = vmatpush1.msra.mxu0 0.0
    %1274 = vmatprep.subr.mxu0 0.0
    %1275 = vmatpush1.msra.mxu0 0.0
    %1276 = vmatprep.subr.mxu0 0.0
    %1277 = vmatpush1.msra.mxu0 0.0
    %1278 = vmatprep.subr.mxu0 0.0
    %1279 = vmatpush1.msra.mxu0 0.0
    %1280 = vmatprep.subr.mxu0 0.0
    %1281 = vmatpush1.msra.mxu0 0.0
    %1282 = vmatprep.subr.mxu0 0.0
    %1283 = vmatpush1.msra.mxu0 0.0
    %1284 = vmatprep.subr.mxu0 0.0
    %1285 = vmatpush1.msra.mxu0 0.0
    %1286 = vmatprep.subr.mxu0 0.0
    %1287 = vmatpush1.msra.mxu0 0.0
    %1288 = vmatprep.subr.mxu0 0.0
    %1289 = vmatpush1.msra.mxu0 0.0
    %1290 = vmatprep.subr.mxu0 0.0
    %1291 = vmatpush1.msra.mxu0 0.0
    %1292 = vmatprep.subr.mxu0 0.0
    %1293 = vmatpush1.msra.mxu0 0.0
    %1294 = vmatprep.subr.mxu0 0.0
    %1295 = vmatpush1.msra.mxu0 0.0
    %1296 = vmatprep.subr.mxu0 0.0
    %1297 = vmatpush1.msra.mxu0 0.0
    %1298 = vmatprep.subr.mxu0 0.0
    %1299 = vmatpush1.msra.mxu0 0.0
    %1300 = vmatprep.subr.mxu0 0.0
    %1301 = vmatpush1.msra.mxu0 0.0
    %1302 = vmatprep.mubr.f32.mxu0 0.0
    %1303 = vmatmul.mubr.f32.gmra.mrb[0].mxu0 %v1233
    %v1304 = vpop.f32.mrb[0].mxu0
    %v1305 = vadd.f32 0.0, %v1304
    %v1306 = vpop.f32.mrb[0].mxu0
    %v1307 = vadd.f32 0.0, %v1306
    %1308 = vdwg.mxu0
    %1309 = vmatprep.subr.mxu0 %v53
    %1310 = vmatpush1.msra.mxu0 %v52
    %1311 = vmatprep.subr.mxu0 %v57
    %1312 = vmatpush1.msra.mxu0 %v56
    %1313 = vmatprep.subr.mxu0 %v61
    %1314 = vmatpush1.msra.mxu0 %v60
    %1315 = vmatprep.subr.mxu0 %v65
    %1316 = vmatpush1.msra.mxu0 %v64
    %1317 = vmatprep.subr.mxu0 %v69
    %1318 = vmatpush1.msra.mxu0 %v68
    %1319 = vmatprep.subr.mxu0 %v73
    %1320 = vmatpush1.msra.mxu0 %v72
    %1321 = vmatprep.subr.mxu0 %v77
    %1322 = vmatpush1.msra.mxu0 %v76
    %1323 = vmatprep.subr.mxu0 %v81
    %1324 = vmatpush1.msra.mxu0 %v80
    %1325 = vmatprep.subr.mxu0 %v85
    %1326 = vmatpush1.msra.mxu0 %v84
    %1327 = vmatprep.subr.mxu0 %v89
    %1328 = vmatpush1.msra.mxu0 %v88
    %1329 = vmatprep.subr.mxu0 %v93
    %1330 = vmatpush1.msra.mxu0 %v92
    %1331 = vmatprep.subr.mxu0 %v97
    %1332 = vmatpush1.msra.mxu0 %v96
    %1333 = vmatprep.subr.mxu0 %v101
    %1334 = vmatpush1.msra.mxu0 %v100
    %1335 = vmatprep.subr.mxu0 %v105
    %1336 = vmatpush1.msra.mxu0 %v104
    %1337 = vmatprep.subr.mxu0 %v109
    %1338 = vmatpush1.msra.mxu0 %v108
    %1339 = vmatprep.subr.mxu0 %v113
    %1340 = vmatpush1.msra.mxu0 %v112
    %1341 = vmatprep.subr.mxu0 0.0
    %1342 = vmatpush1.msra.mxu0 0.0
    %1343 = vmatprep.subr.mxu0 0.0
    %1344 = vmatpush1.msra.mxu0 0.0
    %1345 = vmatprep.subr.mxu0 0.0
    %1346 = vmatpush1.msra.mxu0 0.0
    %1347 = vmatprep.subr.mxu0 0.0
    %1348 = vmatpush1.msra.mxu0 0.0
    %1349 = vmatprep.subr.mxu0 0.0
    %1350 = vmatpush1.msra.mxu0 0.0
    %1351 = vmatprep.subr.mxu0 0.0
    %1352 = vmatpush1.msra.mxu0 0.0
    %1353 = vmatprep.subr.mxu0 0.0
    %1354 = vmatpush1.msra.mxu0 0.0
    %1355 = vmatprep.subr.mxu0 0.0
    %1356 = vmatpush1.msra.mxu0 0.0
    %1357 = vmatprep.subr.mxu0 0.0
    %1358 = vmatpush1.msra.mxu0 0.0
    %1359 = vmatprep.subr.mxu0 0.0
    %1360 = vmatpush1.msra.mxu0 0.0
    %1361 = vmatprep.subr.mxu0 0.0
    %1362 = vmatpush1.msra.mxu0 0.0
    %1363 = vmatprep.subr.mxu0 0.0
    %1364 = vmatpush1.msra.mxu0 0.0
    %1365 = vmatprep.subr.mxu0 0.0
    %1366 = vmatpush1.msra.mxu0 0.0
    %1367 = vmatprep.subr.mxu0 0.0
    %1368 = vmatpush1.msra.mxu0 0.0
    %1369 = vmatprep.subr.mxu0 0.0
    %1370 = vmatpush1.msra.mxu0 0.0
    %1371 = vmatprep.subr.mxu0 0.0
    %1372 = vmatpush1.msra.mxu0 0.0
    %1373 = vmatprep.mubr.f32.mxu0 0.0
    %1374 = vmatmul.mubr.f32.gmra.mrb[0].mxu0 %v1233
    %v1375 = vpop.f32.mrb[0].mxu0
    %v1376 = vadd.f32 0.0, %v1375
    %v1377 = vpop.f32.mrb[0].mxu0
    %v1378 = vadd.f32 0.0, %v1377
    %1379 = vdwg.mxu0
    %v1384 = vcombine.low %v1305, %v1307
    %v1385 = vcombine.low %v1376, %v1378
    %v1387 = vunpack.c.l.s4 1983009808
    %v1388 = vunpack.c.0.s8 %v1387
    %v1389 = vlaneseq
    %v1390 = vshrl.u32 %v1389, 7
    %v1391 = vsub.s32 %v1388, %v1390
    %v1392 = vrot.slane %v1384, %v1391
    %v1394 = vunpack.c.l.s4 1983009808
    %v1395 = vunpack.c.0.s8 %v1394
    %v1396 = vlaneseq
    %v1397 = vshrl.u32 %v1396, 7
    %v1398 = vsub.s32 %v1395, %v1397
    %v1399 = vrot.slane %v1385, %v1398
    %v1400 = vcombine.low %v1392, %v1399
    %v1402 = vadd.f32 %v1237, %v1400
    %v1403 = vmul.f32 %v1402, 0.5
    %v1404 = vtanh.pop %v1403
    %v1405 = vadd.f32 %v1404, 1.0
    %v1406 = vmul.f32 %v1405, 0.5
    %v1408 = vrot.slane %v1402, 6
    %v1410 = vtanh.pop %v1408
    %v1412 = vrot.slane %v1406, 2
    %v1414 = vmul.f32 %v1412, %v1229
    %v1415 = vmul.f32 %v1406, %v1410
    %v1416 = vadd.f32 %v1414, %v1415
    %v1417 = vtanh.pop %v1416
    %v1418 = vrot.slane %v1406, 4
    %v1420 = vmul.f32 %v1418, %v1417
    %s1421 = scalar_lea.vmem [#allocation9], 12
    %1422 = vst [vmem:[%s1421] sm:$0x3] %v1420
    %s1423 = scalar_lea.vmem [#allocation4], 56
    %v1424 = vld [vmem:[%s1423] sm:$0xff]
    %1425 = vmatprep.subr.mxu0 %v51
    %1426 = vmatpush1.msra.mxu0 %v50
    %1427 = vmatprep.subr.mxu0 %v55
    %1428 = vmatpush1.msra.mxu0 %v54
    %1429 = vmatprep.subr.mxu0 %v59
    %1430 = vmatpush1.msra.mxu0 %v58
    %1431 = vmatprep.subr.mxu0 %v63
    %1432 = vmatpush1.msra.mxu0 %v62
    %1433 = vmatprep.subr.mxu0 %v67
    %1434 = vmatpush1.msra.mxu0 %v66
    %1435 = vmatprep.subr.mxu0 %v71
    %1436 = vmatpush1.msra.mxu0 %v70
    %1437 = vmatprep.subr.mxu0 %v75
    %1438 = vmatpush1.msra.mxu0 %v74
    %1439 = vmatprep.subr.mxu0 %v79
    %1440 = vmatpush1.msra.mxu0 %v78
    %1441 = vmatprep.subr.mxu0 %v83
    %1442 = vmatpush1.msra.mxu0 %v82
    %1443 = vmatprep.subr.mxu0 %v87
    %1444 = vmatpush1.msra.mxu0 %v86
    %1445 = vmatprep.subr.mxu0 %v91
    %1446 = vmatpush1.msra.mxu0 %v90
    %1447 = vmatprep.subr.mxu0 %v95
    %1448 = vmatpush1.msra.mxu0 %v94
    %1449 = vmatprep.subr.mxu0 %v99
    %1450 = vmatpush1.msra.mxu0 %v98
    %1451 = vmatprep.subr.mxu0 %v103
    %1452 = vmatpush1.msra.mxu0 %v102
    %1453 = vmatprep.subr.mxu0 %v107
    %1454 = vmatpush1.msra.mxu0 %v106
    %1455 = vmatprep.subr.mxu0 %v111
    %1456 = vmatpush1.msra.mxu0 %v110
    %1457 = vmatprep.subr.mxu0 0.0
    %1458 = vmatpush1.msra.mxu0 0.0
    %1459 = vmatprep.subr.mxu0 0.0
    %1460 = vmatpush1.msra.mxu0 0.0
    %1461 = vmatprep.subr.mxu0 0.0
    %1462 = vmatpush1.msra.mxu0 0.0
    %1463 = vmatprep.subr.mxu0 0.0
    %1464 = vmatpush1.msra.mxu0 0.0
    %1465 = vmatprep.subr.mxu0 0.0
    %1466 = vmatpush1.msra.mxu0 0.0
    %1467 = vmatprep.subr.mxu0 0.0
    %1468 = vmatpush1.msra.mxu0 0.0
    %1469 = vmatprep.subr.mxu0 0.0
    %1470 = vmatpush1.msra.mxu0 0.0
    %1471 = vmatprep.subr.mxu0 0.0
    %1472 = vmatpush1.msra.mxu0 0.0
    %1473 = vmatprep.subr.mxu0 0.0
    %1474 = vmatpush1.msra.mxu0 0.0
    %1475 = vmatprep.subr.mxu0 0.0
    %1476 = vmatpush1.msra.mxu0 0.0
    %1477 = vmatprep.subr.mxu0 0.0
    %1478 = vmatpush1.msra.mxu0 0.0
    %1479 = vmatprep.subr.mxu0 0.0
    %1480 = vmatpush1.msra.mxu0 0.0
    %1481 = vmatprep.subr.mxu0 0.0
    %1482 = vmatpush1.msra.mxu0 0.0
    %1483 = vmatprep.subr.mxu0 0.0
    %1484 = vmatpush1.msra.mxu0 0.0
    %1485 = vmatprep.subr.mxu0 0.0
    %1486 = vmatpush1.msra.mxu0 0.0
    %1487 = vmatprep.subr.mxu0 0.0
    %1488 = vmatpush1.msra.mxu0 0.0
    %1489 = vmatprep.mubr.f32.mxu0 0.0
    %1490 = vmatmul.mubr.f32.gmra.mrb[0].mxu0 %v1420
    %v1491 = vpop.f32.mrb[0].mxu0
    %v1492 = vadd.f32 0.0, %v1491
    %v1493 = vpop.f32.mrb[0].mxu0
    %v1494 = vadd.f32 0.0, %v1493
    %1495 = vdwg.mxu0
    %1496 = vmatprep.subr.mxu0 %v53
    %1497 = vmatpush1.msra.mxu0 %v52
    %1498 = vmatprep.subr.mxu0 %v57
    %1499 = vmatpush1.msra.mxu0 %v56
    %1500 = vmatprep.subr.mxu0 %v61
    %1501 = vmatpush1.msra.mxu0 %v60
    %1502 = vmatprep.subr.mxu0 %v65
    %1503 = vmatpush1.msra.mxu0 %v64
    %1504 = vmatprep.subr.mxu0 %v69
    %1505 = vmatpush1.msra.mxu0 %v68
    %1506 = vmatprep.subr.mxu0 %v73
    %1507 = vmatpush1.msra.mxu0 %v72
    %1508 = vmatprep.subr.mxu0 %v77
    %1509 = vmatpush1.msra.mxu0 %v76
    %1510 = vmatprep.subr.mxu0 %v81
    %1511 = vmatpush1.msra.mxu0 %v80
    %1512 = vmatprep.subr.mxu0 %v85
    %1513 = vmatpush1.msra.mxu0 %v84
    %1514 = vmatprep.subr.mxu0 %v89
    %1515 = vmatpush1.msra.mxu0 %v88
    %1516 = vmatprep.subr.mxu0 %v93
    %1517 = vmatpush1.msra.mxu0 %v92
    %1518 = vmatprep.subr.mxu0 %v97
    %1519 = vmatpush1.msra.mxu0 %v96
    %1520 = vmatprep.subr.mxu0 %v101
    %1521 = vmatpush1.msra.mxu0 %v100
    %1522 = vmatprep.subr.mxu0 %v105
    %1523 = vmatpush1.msra.mxu0 %v104
    %1524 = vmatprep.subr.mxu0 %v109
    %1525 = vmatpush1.msra.mxu0 %v108
    %1526 = vmatprep.subr.mxu0 %v113
    %1527 = vmatpush1.msra.mxu0 %v112
    %1528 = vmatprep.subr.mxu0 0.0
    %1529 = vmatpush1.msra.mxu0 0.0
    %1530 = vmatprep.subr.mxu0 0.0
    %1531 = vmatpush1.msra.mxu0 0.0
    %1532 = vmatprep.subr.mxu0 0.0
    %1533 = vmatpush1.msra.mxu0 0.0
    %1534 = vmatprep.subr.mxu0 0.0
    %1535 = vmatpush1.msra.mxu0 0.0
    %1536 = vmatprep.subr.mxu0 0.0
    %1537 = vmatpush1.msra.mxu0 0.0
    %1538 = vmatprep.subr.mxu0 0.0
    %1539 = vmatpush1.msra.mxu0 0.0
    %1540 = vmatprep.subr.mxu0 0.0
    %1541 = vmatpush1.msra.mxu0 0.0
    %1542 = vmatprep.subr.mxu0 0.0
    %1543 = vmatpush1.msra.mxu0 0.0
    %1544 = vmatprep.subr.mxu0 0.0
    %1545 = vmatpush1.msra.mxu0 0.0
    %1546 = vmatprep.subr.mxu0 0.0
    %1547 = vmatpush1.msra.mxu0 0.0
    %1548 = vmatprep.subr.mxu0 0.0
    %1549 = vmatpush1.msra.mxu0 0.0
    %1550 = vmatprep.subr.mxu0 0.0
    %1551 = vmatpush1.msra.mxu0 0.0
    %1552 = vmatprep.subr.mxu0 0.0
    %1553 = vmatpush1.msra.mxu0 0.0
    %1554 = vmatprep.subr.mxu0 0.0
    %1555 = vmatpush1.msra.mxu0 0.0
    %1556 = vmatprep.subr.mxu0 0.0
    %1557 = vmatpush1.msra.mxu0 0.0
    %1558 = vmatprep.subr.mxu0 0.0
    %1559 = vmatpush1.msra.mxu0 0.0
    %1560 = vmatprep.mubr.f32.mxu0 0.0
    %1561 = vmatmul.mubr.f32.gmra.mrb[0].mxu0 %v1420
    %v1562 = vpop.f32.mrb[0].mxu0
    %v1563 = vadd.f32 0.0, %v1562
    %v1564 = vpop.f32.mrb[0].mxu0
    %v1565 = vadd.f32 0.0, %v1564
    %1566 = vdwg.mxu0
    %v1571 = vcombine.low %v1492, %v1494
    %v1572 = vcombine.low %v1563, %v1565
    %v1574 = vunpack.c.l.s4 1983009808
    %v1575 = vunpack.c.0.s8 %v1574
    %v1576 = vlaneseq
    %v1577 = vshrl.u32 %v1576, 7
    %v1578 = vsub.s32 %v1575, %v1577
    %v1579 = vrot.slane %v1571, %v1578
    %v1581 = vunpack.c.l.s4 1983009808
    %v1582 = vunpack.c.0.s8 %v1581
    %v1583 = vlaneseq
    %v1584 = vshrl.u32 %v1583, 7
    %v1585 = vsub.s32 %v1582, %v1584
    %v1586 = vrot.slane %v1572, %v1585
    %v1587 = vcombine.low %v1579, %v1586
    %v1589 = vadd.f32 %v1424, %v1587
    %v1590 = vmul.f32 %v1589, 0.5
    %v1591 = vtanh.pop %v1590
    %v1592 = vadd.f32 %v1591, 1.0
    %v1593 = vmul.f32 %v1592, 0.5
    %v1595 = vrot.slane %v1589, 6
    %v1597 = vtanh.pop %v1595
    %v1599 = vrot.slane %v1593, 2
    %v1601 = vmul.f32 %v1599, %v1416
    %v1602 = vmul.f32 %v1593, %v1597
    %v1603 = vadd.f32 %v1601, %v1602
    %v1604 = vtanh.pop %v1603
    %v1605 = vrot.slane %v1593, 4
    %v1607 = vmul.f32 %v1605, %v1604
    %s1608 = scalar_lea.vmem [#allocation9], 14
    %1609 = vst [vmem:[%s1608] sm:$0x3] %v1607
    %1610 = vst [vmem:[#allocation2] sm:$0x3] %v1607
    %1611 = vst [vmem:[#allocation3] sm:$0x3] %v1603
    // Predicated region
    $region22: #{tpu_custom_call.1} parent=1 // pred_check
      %p1612 = pneg %p44
    $region23: #{tpu_custom_call.1} parent=1 // pred_check_branch
      %1614 = sbr.rel (%p1612) target = $region25
    $region24: #{tpu_custom_call.1} parent=1 // pred_region
      %v1615 = vld [vmem:[#allocation2] sm:$0x3]
      %1616 = vst [vmem:[#allocation10] sm:$0x3] %v1615
      %v1617 = vld [vmem:[#allocation3] sm:$0x3]
      %1618 = vst [vmem:[#allocation12] sm:$0x3] %v1617
    $region25: #{tpu_custom_call.1} parent=1 // pred_fallthru
      _
    // Predicated region
    $region26: #{tpu_custom_call.1} parent=1 // pred_check
      _
    $region27: #{tpu_custom_call.1} parent=1 // pred_check_branch
      %1620 = sbr.rel (0) target = $region29
    $region28: #{tpu_custom_call.1} parent=1 // pred_region
      %s1622 = ssub.s32 256, 256
      %1623 = vsyncadd [#allocation6], %s1622
      %s1624 = sshll.u32 [#allocation9], 4
      %s1625 = int_to_ptr.vmem [resolvable:$true] %s1624
      %1630 = dma.vmem_to_hbm [thread:$0]  %s1625, 256, %s2, [#allocation6], 32, 32, 2
    $region29: #{tpu_custom_call.1} parent=1 // pred_fallthru
      _
    // Predicated region
    $region30: #{tpu_custom_call.1} parent=1 // pred_check
      _
    $region31: #{tpu_custom_call.1} parent=1 // pred_check_branch
      %1632 = sbr.rel (0) target = $region33
    $region32: #{tpu_custom_call.1} parent=1 // pred_region
      %s1634 = ssub.s32 32, 32
      %1635 = vsyncadd [#allocation11], %s1634
      %s1637 = sshll.u32 [#allocation10], 4
      %s1638 = int_to_ptr.vmem [resolvable:$true] %s1637
      %1640 = dma.vmem_to_hbm [thread:$0]  %s1638, 32, %s3, [#allocation11]
    $region33: #{tpu_custom_call.1} parent=1 // pred_fallthru
      _
    // Predicated region
    $region34: #{tpu_custom_call.1} parent=1 // pred_check
      _
    $region35: #{tpu_custom_call.1} parent=1 // pred_check_branch
      %1642 = sbr.rel (0) target = $region37
    $region36: #{tpu_custom_call.1} parent=1 // pred_region
      %s1644 = ssub.s32 32, 32
      %1645 = vsyncadd [#allocation11], %s1644
      %s1647 = sshll.u32 [#allocation12], 4
      %s1648 = int_to_ptr.vmem [resolvable:$true] %s1647
      %1650 = dma.vmem_to_hbm [thread:$0]  %s1648, 32, %s4, [#allocation11]
    $region37: #{tpu_custom_call.1} parent=1 // pred_fallthru
      _
    // Predicated region
    $region38: #{tpu_custom_call.1} parent=1 // pred_check
      _
    $region39: #{tpu_custom_call.1} parent=1 // pred_check_branch
      %1652 = sbr.rel (0) target = $region41
    $region40: #{tpu_custom_call.1} parent=1 // pred_region
      %1653 = dma.done [#allocation6], 256
    $region41: #{tpu_custom_call.1} parent=1 // pred_fallthru
      _
    // Predicated region
    $region42: #{tpu_custom_call.1} parent=1 // pred_check
      _
    $region43: #{tpu_custom_call.1} parent=1 // pred_check_branch
      %1655 = sbr.rel (0) target = $region45
    $region44: #{tpu_custom_call.1} parent=1 // pred_region
      %1656 = dma.done [#allocation11], 32
    $region45: #{tpu_custom_call.1} parent=1 // pred_fallthru
      _
    // Predicated region
    $region46: #{tpu_custom_call.1} parent=1 // pred_check
      _
    $region47: #{tpu_custom_call.1} parent=1 // pred_check_branch
      %1658 = sbr.rel (0) target = $region49
    $region48: #{tpu_custom_call.1} parent=1 // pred_region
      %1659 = dma.done [#allocation11], 32
    $region49: #{tpu_custom_call.1} parent=1 // pred_fallthru
      _
    %1660 = vsyncpa [#allocation5], 1
    %1661 = vsyncpa [#allocation8], 1
    %1662 = vsyncpa [#allocation6], 1
    %1663 = vsyncpa [#allocation11], 1

</llo_original>
